<compile_context>
chip_gen: v7x
topology: tpu7x:2x2x1
jax: 0.10.0
libtpu: 0.0.40
codegen_flags: <defaults>
</compile_context>

<pallas_src>
import functools

import jax
import jax.numpy as jnp
from jax import lax
from jax.experimental import pallas as pl
from jax.experimental.pallas import tpu as pltpu

_CHUNK = 128      # in-kernel M sub-tile (rows) for the 5-layer chain
_N_PAD = 128      # last layer padded 2 -> 128 lanes for lane-dense output stores
_OUT_DIM = 2
_IN_DIM = 66


def _round_up(x, m):
    return ((x + m - 1) // m) * m


def mlp_kernel(x_ref,
               w1_ref, b1_ref,
               w2_ref, b2_ref,
               w3_ref, b3_ref,
               w4_ref, b4_ref,
               w5_ref, b5_ref,
               o_ref):
    """One batch tile of the full MLP, processed in _CHUNK-row sub-tiles."""
    n_chunks = x_ref.shape[0] // _CHUNK  # static (block shape)

    def chunk_body(m, carry):
        r = pl.multiple_of(m * _CHUNK, _CHUNK)
        x = x_ref[pl.ds(r, _CHUNK), :].astype(jnp.bfloat16)

        h = jnp.dot(x, w1_ref[...], preferred_element_type=jnp.float32)
        h = jnp.maximum(h + b1_ref[...], 0.0)

        h = jnp.dot(h.astype(jnp.bfloat16), w2_ref[...],
                    preferred_element_type=jnp.float32)
        h = jnp.maximum(h + b2_ref[...], 0.0)

        h = jnp.dot(h.astype(jnp.bfloat16), w3_ref[...],
                    preferred_element_type=jnp.float32)
        h = jnp.maximum(h + b3_ref[...], 0.0)

        h = jnp.dot(h.astype(jnp.bfloat16), w4_ref[...],
                    preferred_element_type=jnp.float32)
        h = jnp.maximum(h + b4_ref[...], 0.0)

        h = jnp.dot(h.astype(jnp.bfloat16), w5_ref[...],
                    preferred_element_type=jnp.float32)
        h = h + b5_ref[...]

        o_ref[pl.ds(r, _CHUNK), :] = h.astype(o_ref.dtype)
        return carry

    lax.fori_loop(0, n_chunks, chunk_body, 0,
                  unroll=2 if n_chunks > 1 else 1)


def prepare_params(params):
    """One-time weight prep (hoisted out of the hot path): bf16 weights, (1, N) f32
    biases, last layer zero-padded to _N_PAD output lanes (numerically exact)."""
    prepped = []
    n = len(params)
    for i, (W, b) in enumerate(params):
        if i == n - 1:
            W = jnp.pad(W, ((0, 0), (0, _N_PAD - W.shape[1])))
            b = jnp.pad(b, (0, _N_PAD - b.shape[0]))
        prepped.append((W.astype(jnp.bfloat16),
                        b.reshape(1, -1).astype(jnp.float32)))
    return prepped


@functools.partial(jax.jit, static_argnames=("block_rows",))
def mlp_t_forward(x, prepped, *, block_rows=2048):
    """x: (B, 66) float32. prepped: output of prepare_params(). Returns (B, 2) f32."""
    B, K_in = x.shape

    # Batch tile: clamp to the 128-rounded batch so small batches don't over-pad,
    # and split into >= 2 grid steps when possible (feeds both v7x TensorCores).
    BM = min(block_rows, _round_up(B, _CHUNK))
    if _round_up(B, BM) == BM and BM >= 2 * _CHUNK:
        BM = _round_up(BM // 2, _CHUNK)
    B_pad = _round_up(B, BM)

    # Row-only pad; x stays f32 — the bf16 cast happens in-kernel on the VPU.
    x_p = jnp.pad(x, ((0, B_pad - B), (0, 0)))

    args = [x_p]
    in_specs = [pl.BlockSpec((BM, K_in), lambda i: (i, 0))]
    for W, b in prepped:
        args.append(W)
        in_specs.append(pl.BlockSpec(W.shape, lambda i: (0, 0)))   # VMEM-resident
        args.append(b)
        in_specs.append(pl.BlockSpec(b.shape, lambda i: (0, 0)))   # VMEM-resident

    out = pl.pallas_call(
        mlp_kernel,
        out_shape=jax.ShapeDtypeStruct((B_pad, _N_PAD), jnp.float32),
        grid=(B_pad // BM,),
        in_specs=in_specs,
        out_specs=pl.BlockSpec((BM, _N_PAD), lambda i: (i, 0)),
        compiler_params=pltpu.CompilerParams(
            dimension_semantics=("parallel",),
        ),
    )(*args)

    return out[:B, :_OUT_DIM]


def init_params(key):
    """Deterministic init matching mlp_t layer shapes.
    PyTorch Linear(in, out) stores weight as (out, in); here we keep (in, out)."""
    dims = [(66, 256), (256, 256), (256, 256), (256, 256), (256, 2)]
    params = []
    for (fan_in, fan_out) in dims:
        key, kw, kb = jax.random.split(key, 3)
        bound = 1.0 / jnp.sqrt(fan_in)
        W = jax.random.uniform(kw, (fan_in, fan_out), jnp.float32, -bound, bound)
        b = jax.random.uniform(kb, (fan_out,), jnp.float32, -bound, bound)
        params.append((W, b))
    return params


def reference_forward(x, params):
    h = x
    for i, (W, b) in enumerate(params):
        h = h @ W + b
        if i < len(params) - 1:
            h = jnp.maximum(h, 0.0)
    return h


if __name__ == "__main__":
    key = jax.random.PRNGKey(0)
    kx, kp = jax.random.split(key)
    B = 8
    x = jax.random.normal(kx, (B, _IN_DIM), jnp.float32)
    params = init_params(kp)
    prepped = prepare_params(params)

    out = mlp_t_forward(x, prepped, block_rows=2048)
    out = jax.block_until_ready(out)

    ref = reference_forward(x, params)
    assert out.shape == (B, _OUT_DIM), out.shape
    # bf16 matmul inputs vs f32 reference -> looser tolerance.
    assert jnp.allclose(out, ref, atol=5e-2, rtol=5e-2), "mismatch vs reference"

    print("KERNEL_OK")
</pallas_src>

<mosaic_0001>
module attributes {stable_mosaic.version = 11 : i64} {
  func.func @mlp_kernel(%arg0: i32, %arg1: memref<128x66xf32, #tpu.memory_space<vmem>>, %arg2: memref<66x256xbf16, #tpu.memory_space<vmem>>, %arg3: memref<1x256xf32, #tpu.memory_space<vmem>>, %arg4: memref<256x256xbf16, #tpu.memory_space<vmem>>, %arg5: memref<1x256xf32, #tpu.memory_space<vmem>>, %arg6: memref<256x256xbf16, #tpu.memory_space<vmem>>, %arg7: memref<1x256xf32, #tpu.memory_space<vmem>>, %arg8: memref<256x256xbf16, #tpu.memory_space<vmem>>, %arg9: memref<1x256xf32, #tpu.memory_space<vmem>>, %arg10: memref<256x128xbf16, #tpu.memory_space<vmem>>, %arg11: memref<1x128xf32, #tpu.memory_space<vmem>>, %arg12: memref<128x128xf32, #tpu.memory_space<vmem>>) attributes {dimension_semantics = [#tpu.dimension_semantics<parallel>], iteration_bounds = array<i64: 1>, scalar_prefetch = 0 : i64, scratch_operands = 0 : i64, tpu.core_type = #tpu.core_type<tc>, window_params = [{transform_indices = @transform_0, window_bounds = array<i64: 128, 66>}, {pipeline_mode = #tpu.pipeline_mode<synchronous>, transform_indices = @transform_1, window_bounds = array<i64: 66, 256>}, {pipeline_mode = #tpu.pipeline_mode<synchronous>, transform_indices = @transform_2, window_bounds = array<i64: 1, 256>}, {pipeline_mode = #tpu.pipeline_mode<synchronous>, transform_indices = @transform_3, window_bounds = array<i64: 256, 256>}, {pipeline_mode = #tpu.pipeline_mode<synchronous>, transform_indices = @transform_4, window_bounds = array<i64: 1, 256>}, {pipeline_mode = #tpu.pipeline_mode<synchronous>, transform_indices = @transform_5, window_bounds = array<i64: 256, 256>}, {pipeline_mode = #tpu.pipeline_mode<synchronous>, transform_indices = @transform_6, window_bounds = array<i64: 1, 256>}, {pipeline_mode = #tpu.pipeline_mode<synchronous>, transform_indices = @transform_7, window_bounds = array<i64: 256, 256>}, {pipeline_mode = #tpu.pipeline_mode<synchronous>, transform_indices = @transform_8, window_bounds = array<i64: 1, 256>}, {pipeline_mode = #tpu.pipeline_mode<synchronous>, transform_indices = @transform_9, window_bounds = array<i64: 256, 128>}, {pipeline_mode = #tpu.pipeline_mode<synchronous>, transform_indices = @transform_10, window_bounds = array<i64: 1, 128>}, {transform_indices = @transform_11, window_bounds = array<i64: 128, 128>}]} {
    %c0_i32 = arith.constant 0 : i32
    %c128_i32 = arith.constant 128 : i32
    %0 = arith.muli %c0_i32, %c128_i32 : i32
    %1 = tpu.assume_multiple %0, 128 : i32
    %2 = arith.index_cast %1 : i32 to index
    %c0 = arith.constant 0 : index
    %3 = vector.load %arg1[%2, %c0] : memref<128x66xf32, #tpu.memory_space<vmem>>, vector<128x66xf32>
    %4 = arith.truncf %3 : vector<128x66xf32> to vector<128x66xbf16>
    %c0_0 = arith.constant 0 : index
    %c0_1 = arith.constant 0 : index
    %5 = vector.load %arg2[%c0_0, %c0_1] : memref<66x256xbf16, #tpu.memory_space<vmem>>, vector<66x256xbf16>
    %cst = arith.constant dense<0.000000e+00> : vector<128x256xf32>
    %6 = tpu.matmul %4, %5, %cst {dimension_numbers = #tpu.dot_dimension_numbers<[1], [0], [0], [1], [0, 0, 1, 1], [], []>} : vector<128x66xbf16>, vector<66x256xbf16>, vector<128x256xf32> -> vector<128x256xf32>
    %c0_2 = arith.constant 0 : index
    %c0_3 = arith.constant 0 : index
    %7 = vector.load %arg3[%c0_2, %c0_3] : memref<1x256xf32, #tpu.memory_space<vmem>>, vector<1x256xf32>
    %8 = vector.broadcast %7 : vector<1x256xf32> to vector<128x256xf32>
    %9 = arith.addf %6, %8 : vector<128x256xf32>
    %cst_4 = arith.constant 0.000000e+00 : f32
    %10 = vector.broadcast %cst_4 : f32 to vector<128x256xf32>
    %11 = arith.maximumf %9, %10 : vector<128x256xf32>
    %12 = arith.truncf %11 : vector<128x256xf32> to vector<128x256xbf16>
    %c0_5 = arith.constant 0 : index
    %c0_6 = arith.constant 0 : index
    %13 = vector.load %arg4[%c0_5, %c0_6] : memref<256x256xbf16, #tpu.memory_space<vmem>>, vector<256x256xbf16>
    %cst_7 = arith.constant dense<0.000000e+00> : vector<128x256xf32>
    %14 = tpu.matmul %12, %13, %cst_7 {dimension_numbers = #tpu.dot_dimension_numbers<[1], [0], [0], [1], [0, 0, 1, 1], [], []>} : vector<128x256xbf16>, vector<256x256xbf16>, vector<128x256xf32> -> vector<128x256xf32>
    %c0_8 = arith.constant 0 : index
    %c0_9 = arith.constant 0 : index
    %15 = vector.load %arg5[%c0_8, %c0_9] : memref<1x256xf32, #tpu.memory_space<vmem>>, vector<1x256xf32>
    %16 = vector.broadcast %15 : vector<1x256xf32> to vector<128x256xf32>
    %17 = arith.addf %14, %16 : vector<128x256xf32>
    %cst_10 = arith.constant 0.000000e+00 : f32
    %18 = vector.broadcast %cst_10 : f32 to vector<128x256xf32>
    %19 = arith.maximumf %17, %18 : vector<128x256xf32>
    %20 = arith.truncf %19 : vector<128x256xf32> to vector<128x256xbf16>
    %c0_11 = arith.constant 0 : index
    %c0_12 = arith.constant 0 : index
    %21 = vector.load %arg6[%c0_11, %c0_12] : memref<256x256xbf16, #tpu.memory_space<vmem>>, vector<256x256xbf16>
    %cst_13 = arith.constant dense<0.000000e+00> : vector<128x256xf32>
    %22 = tpu.matmul %20, %21, %cst_13 {dimension_numbers = #tpu.dot_dimension_numbers<[1], [0], [0], [1], [0, 0, 1, 1], [], []>} : vector<128x256xbf16>, vector<256x256xbf16>, vector<128x256xf32> -> vector<128x256xf32>
    %c0_14 = arith.constant 0 : index
    %c0_15 = arith.constant 0 : index
    %23 = vector.load %arg7[%c0_14, %c0_15] : memref<1x256xf32, #tpu.memory_space<vmem>>, vector<1x256xf32>
    %24 = vector.broadcast %23 : vector<1x256xf32> to vector<128x256xf32>
    %25 = arith.addf %22, %24 : vector<128x256xf32>
    %cst_16 = arith.constant 0.000000e+00 : f32
    %26 = vector.broadcast %cst_16 : f32 to vector<128x256xf32>
    %27 = arith.maximumf %25, %26 : vector<128x256xf32>
    %28 = arith.truncf %27 : vector<128x256xf32> to vector<128x256xbf16>
    %c0_17 = arith.constant 0 : index
    %c0_18 = arith.constant 0 : index
    %29 = vector.load %arg8[%c0_17, %c0_18] : memref<256x256xbf16, #tpu.memory_space<vmem>>, vector<256x256xbf16>
    %cst_19 = arith.constant dense<0.000000e+00> : vector<128x256xf32>
    %30 = tpu.matmul %28, %29, %cst_19 {dimension_numbers = #tpu.dot_dimension_numbers<[1], [0], [0], [1], [0, 0, 1, 1], [], []>} : vector<128x256xbf16>, vector<256x256xbf16>, vector<128x256xf32> -> vector<128x256xf32>
    %c0_20 = arith.constant 0 : index
    %c0_21 = arith.constant 0 : index
    %31 = vector.load %arg9[%c0_20, %c0_21] : memref<1x256xf32, #tpu.memory_space<vmem>>, vector<1x256xf32>
    %32 = vector.broadcast %31 : vector<1x256xf32> to vector<128x256xf32>
    %33 = arith.addf %30, %32 : vector<128x256xf32>
    %cst_22 = arith.constant 0.000000e+00 : f32
    %34 = vector.broadcast %cst_22 : f32 to vector<128x256xf32>
    %35 = arith.maximumf %33, %34 : vector<128x256xf32>
    %36 = arith.truncf %35 : vector<128x256xf32> to vector<128x256xbf16>
    %c0_23 = arith.constant 0 : index
    %c0_24 = arith.constant 0 : index
    %37 = vector.load %arg10[%c0_23, %c0_24] : memref<256x128xbf16, #tpu.memory_space<vmem>>, vector<256x128xbf16>
    %cst_25 = arith.constant dense<0.000000e+00> : vector<128x128xf32>
    %38 = tpu.matmul %36, %37, %cst_25 {dimension_numbers = #tpu.dot_dimension_numbers<[1], [0], [0], [1], [0, 0, 1, 1], [], []>} : vector<128x256xbf16>, vector<256x128xbf16>, vector<128x128xf32> -> vector<128x128xf32>
    %c0_26 = arith.constant 0 : index
    %c0_27 = arith.constant 0 : index
    %39 = vector.load %arg11[%c0_26, %c0_27] : memref<1x128xf32, #tpu.memory_space<vmem>>, vector<1x128xf32>
    %40 = vector.broadcast %39 : vector<1x128xf32> to vector<128x128xf32>
    %41 = arith.addf %38, %40 : vector<128x128xf32>
    %42 = arith.index_cast %1 : i32 to index
    %c0_28 = arith.constant 0 : index
    %43 = vector.load %arg12[%42, %c0_28] : memref<128x128xf32, #tpu.memory_space<vmem>>, vector<128x128xf32>
    tpu.vector_store %arg12[%42, %c0_28], %41 {strides = array<i32>} : memref<128x128xf32, #tpu.memory_space<vmem>>, vector<128x128xf32>,
    %c1_i32 = arith.constant 1 : i32
    return
  }
  func.func @transform_0(%arg0: i32) -> (i32, i32) {
    %c0_i32 = arith.constant 0 : i32
    %c0_i32_0 = arith.constant 0 : i32
    return %arg0, %c0_i32 : i32, i32
  }
  func.func @transform_1(%arg0: i32) -> (i32, i32) {
    %c0_i32 = arith.constant 0 : i32
    %c0_i32_0 = arith.constant 0 : i32
    %c0_i32_1 = arith.constant 0 : i32
    return %c0_i32, %c0_i32_0 : i32, i32
  }
  func.func @transform_2(%arg0: i32) -> (i32, i32) {
    %c0_i32 = arith.constant 0 : i32
    %c0_i32_0 = arith.constant 0 : i32
    %c0_i32_1 = arith.constant 0 : i32
    return %c0_i32, %c0_i32_0 : i32, i32
  }
  func.func @transform_3(%arg0: i32) -> (i32, i32) {
    %c0_i32 = arith.constant 0 : i32
    %c0_i32_0 = arith.constant 0 : i32
    %c0_i32_1 = arith.constant 0 : i32
    return %c0_i32, %c0_i32_0 : i32, i32
  }
  func.func @transform_4(%arg0: i32) -> (i32, i32) {
    %c0_i32 = arith.constant 0 : i32
    %c0_i32_0 = arith.constant 0 : i32
    %c0_i32_1 = arith.constant 0 : i32
    return %c0_i32, %c0_i32_0 : i32, i32
  }
  func.func @transform_5(%arg0: i32) -> (i32, i32) {
    %c0_i32 = arith.constant 0 : i32
    %c0_i32_0 = arith.constant 0 : i32
    %c0_i32_1 = arith.constant 0 : i32
    return %c0_i32, %c0_i32_0 : i32, i32
  }
  func.func @transform_6(%arg0: i32) -> (i32, i32) {
    %c0_i32 = arith.constant 0 : i32
    %c0_i32_0 = arith.constant 0 : i32
    %c0_i32_1 = arith.constant 0 : i32
    return %c0_i32, %c0_i32_0 : i32, i32
  }
  func.func @transform_7(%arg0: i32) -> (i32, i32) {
    %c0_i32 = arith.constant 0 : i32
    %c0_i32_0 = arith.constant 0 : i32
    %c0_i32_1 = arith.constant 0 : i32
    return %c0_i32, %c0_i32_0 : i32, i32
  }
  func.func @transform_8(%arg0: i32) -> (i32, i32) {
    %c0_i32 = arith.constant 0 : i32
    %c0_i32_0 = arith.constant 0 : i32
    %c0_i32_1 = arith.constant 0 : i32
    return %c0_i32, %c0_i32_0 : i32, i32
  }
  func.func @transform_9(%arg0: i32) -> (i32, i32) {
    %c0_i32 = arith.constant 0 : i32
    %c0_i32_0 = arith.constant 0 : i32
    %c0_i32_1 = arith.constant 0 : i32
    return %c0_i32, %c0_i32_0 : i32, i32
  }
  func.func @transform_10(%arg0: i32) -> (i32, i32) {
    %c0_i32 = arith.constant 0 : i32
    %c0_i32_0 = arith.constant 0 : i32
    %c0_i32_1 = arith.constant 0 : i32
    return %c0_i32, %c0_i32_0 : i32, i32
  }
  func.func @transform_11(%arg0: i32) -> (i32, i32) {
    %c0_i32 = arith.constant 0 : i32
    %c0_i32_0 = arith.constant 0 : i32
    return %arg0, %c0_i32 : i32, i32
  }
}

</mosaic_0001>

<llo_original>
// kernel: mlp_t_forward.1
$region0: #{mlp_t_forward.1}
  #allocation0 [shape = 'u32[]', space=smem, size = 0x4, offset = 0x4, fixed_abs, tag = 'smem constant byte address 0x4 - core index']
  #allocation1 [shape = 'u32[144,128]{1,0:T(1,128)}', space=vmem, size = 0x12000, scoped, tag = 'internal scratch']
  %s0 = inlined_call_operand.vmem [shape: f32[128,66], index: 0, kind: input, shape index: {}]
  %s1 = inlined_call_operand.hbm [shape: bf16[66,256], index: 1, kind: input, shape index: {}]
  %s2 = inlined_call_operand.vmem [shape: f32[1,256], index: 2, kind: input, shape index: {}]
  %s3 = inlined_call_operand.hbm [shape: bf16[256,256], index: 3, kind: input, shape index: {}]
  %s4 = inlined_call_operand.vmem [shape: f32[1,256], index: 4, kind: input, shape index: {}]
  %s5 = inlined_call_operand.hbm [shape: bf16[256,256], index: 5, kind: input, shape index: {}]
  %s6 = inlined_call_operand.vmem [shape: f32[1,256], index: 6, kind: input, shape index: {}]
  %s7 = inlined_call_operand.hbm [shape: bf16[256,256], index: 7, kind: input, shape index: {}]
  %s8 = inlined_call_operand.vmem [shape: f32[1,256], index: 8, kind: input, shape index: {}]
  %s9 = inlined_call_operand.vmem [shape: bf16[256,128], index: 9, kind: input, shape index: {}]
  %s10 = inlined_call_operand.vmem [shape: f32[1,128], index: 10, kind: input, shape index: {}]
  %s11 = inlined_call_operand.vmem [shape: f32[128,128], index: 11, kind: output, shape index: {}]
  %s12 = sld [smem:[#allocation0]]
  $region70: #{mlp_t_forward.1} parent=0
    _
  %s14 = ssub.s32 1, %s12
  %s15 = scalar_select 0, %s14, %s12
  $region1: #{mlp_t_forward.1} parent=0
    #allocation2 [shape = 'u8[36864]{0}', space=vmem, size = 0x9000, scoped, tag = 'input window, operand 1, single buffered']
    #allocation3 [shape = 's32[1]{0}', space=sflag, size = 0x4, scoped, tag = 'scoped memory for mlp_t_forward.1']
    #allocation4 [shape = 'u8[131072]{0}', space=vmem, size = 0x20000, scoped, tag = 'input window, operand 3, single buffered']
    #allocation5 [shape = 's32[1]{0}', space=sflag, size = 0x4, scoped, tag = 'scoped memory for mlp_t_forward.1']
    #allocation6 [shape = 'u8[131072]{0}', space=vmem, size = 0x20000, scoped, tag = 'input window, operand 5, single buffered']
    #allocation7 [shape = 'u8[131072]{0}', space=vmem, size = 0x20000, scoped, tag = 'input window, operand 7, single buffered']
    #allocation8 [shape = 's32[1]{0}', space=sflag, size = 0x4, scoped, tag = 'scoped memory for mlp_t_forward.1']
    %16 = vsyncpa [#allocation3], 0
    %17 = vsyncpa [#allocation5], 0
    %18 = vsyncpa [#allocation8], 0
    // Predicated region
    $region2: #{mlp_t_forward.1} parent=1 // pred_check
      _
    $region3: #{mlp_t_forward.1} parent=1 // pred_check_branch
      %20 = sbr.rel (0) target = $region5
    $region4: #{mlp_t_forward.1} parent=1 // pred_region
      _
    $region5: #{mlp_t_forward.1} parent=1 // pred_fallthru
      _
    // Predicated region
    $region6: #{mlp_t_forward.1} parent=1 // pred_check
      _
    $region7: #{mlp_t_forward.1} parent=1 // pred_check_branch
      %22 = sbr.rel (0) target = $region9
    $region8: #{mlp_t_forward.1} parent=1 // pred_region
      %s24 = ssub.s32 1152, 1152
      %25 = vsyncadd [#allocation3], %s24
      %s26 = sshll.u32 [#allocation2], 4
      %s27 = int_to_ptr.vmem [resolvable:$true] %s26
      %32 = dma.hbm_to_vmem [thread:$0]  %s1, 1152, %s27, [#allocation3], 128, 128, 8
    $region9: #{mlp_t_forward.1} parent=1 // pred_fallthru
      _
    // Predicated region
    $region10: #{mlp_t_forward.1} parent=1 // pred_check
      _
    $region11: #{mlp_t_forward.1} parent=1 // pred_check_branch
      %34 = sbr.rel (0) target = $region13
    $region12: #{mlp_t_forward.1} parent=1 // pred_region
      _
    $region13: #{mlp_t_forward.1} parent=1 // pred_fallthru
      _
    // Predicated region
    $region14: #{mlp_t_forward.1} parent=1 // pred_check
      _
    $region15: #{mlp_t_forward.1} parent=1 // pred_check_branch
      %36 = sbr.rel (0) target = $region17
    $region16: #{mlp_t_forward.1} parent=1 // pred_region
      %s38 = ssub.s32 4096, 4096
      %39 = vsyncadd [#allocation5], %s38
      %s40 = sshll.u32 [#allocation4], 4
      %s41 = int_to_ptr.vmem [resolvable:$true] %s40
      %46 = dma.hbm_to_vmem [thread:$0]  %s3, 4096, %s41, [#allocation5], 128, 128, 8
    $region17: #{mlp_t_forward.1} parent=1 // pred_fallthru
      _
    // Predicated region
    $region18: #{mlp_t_forward.1} parent=1 // pred_check
      _
    $region19: #{mlp_t_forward.1} parent=1 // pred_check_branch
      %48 = sbr.rel (0) target = $region21
    $region20: #{mlp_t_forward.1} parent=1 // pred_region
      _
    $region21: #{mlp_t_forward.1} parent=1 // pred_fallthru
      _
    // Predicated region
    $region22: #{mlp_t_forward.1} parent=1 // pred_check
      _
    $region23: #{mlp_t_forward.1} parent=1 // pred_check_branch
      %50 = sbr.rel (0) target = $region25
    $region24: #{mlp_t_forward.1} parent=1 // pred_region
      %s52 = ssub.s32 4096, 4096
      %53 = vsyncadd [#allocation5], %s52
      %s54 = sshll.u32 [#allocation6], 4
      %s55 = int_to_ptr.vmem [resolvable:$true] %s54
      %60 = dma.hbm_to_vmem [thread:$0]  %s5, 4096, %s55, [#allocation5], 128, 128, 8
    $region25: #{mlp_t_forward.1} parent=1 // pred_fallthru
      _
    // Predicated region
    $region26: #{mlp_t_forward.1} parent=1 // pred_check
      _
    $region27: #{mlp_t_forward.1} parent=1 // pred_check_branch
      %62 = sbr.rel (0) target = $region29
    $region28: #{mlp_t_forward.1} parent=1 // pred_region
      _
    $region29: #{mlp_t_forward.1} parent=1 // pred_fallthru
      _
    // Predicated region
    $region30: #{mlp_t_forward.1} parent=1 // pred_check
      _
    $region31: #{mlp_t_forward.1} parent=1 // pred_check_branch
      %64 = sbr.rel (0) target = $region33
    $region32: #{mlp_t_forward.1} parent=1 // pred_region
      %s66 = ssub.s32 4096, 4096
      %67 = vsyncadd [#allocation8], %s66
      %s68 = sshll.u32 [#allocation7], 4
      %s69 = int_to_ptr.vmem [resolvable:$true] %s68
      %74 = dma.hbm_to_vmem [thread:$0]  %s7, 4096, %s69, [#allocation8], 128, 128, 8
    $region33: #{mlp_t_forward.1} parent=1 // pred_fallthru
      _
    // Predicated region
    $region34: #{mlp_t_forward.1} parent=1 // pred_check
      _
    $region35: #{mlp_t_forward.1} parent=1 // pred_check_branch
      %76 = sbr.rel (0) target = $region37
    $region36: #{mlp_t_forward.1} parent=1 // pred_region
      _
    $region37: #{mlp_t_forward.1} parent=1 // pred_fallthru
      _
    // Predicated region
    $region38: #{mlp_t_forward.1} parent=1 // pred_check
      _
    $region39: #{mlp_t_forward.1} parent=1 // pred_check_branch
      %78 = sbr.rel (0) target = $region41
    $region40: #{mlp_t_forward.1} parent=1 // pred_region
      _
    $region41: #{mlp_t_forward.1} parent=1 // pred_fallthru
      _
    // Predicated region
    $region42: #{mlp_t_forward.1} parent=1 // pred_check
      _
    $region43: #{mlp_t_forward.1} parent=1 // pred_check_branch
      %80 = sbr.rel (0) target = $region45
    $region44: #{mlp_t_forward.1} parent=1 // pred_region
      _
    $region45: #{mlp_t_forward.1} parent=1 // pred_fallthru
      _
    // Predicated region
    $region46: #{mlp_t_forward.1} parent=1 // pred_check
      _
    $region47: #{mlp_t_forward.1} parent=1 // pred_check_branch
      %82 = sbr.rel (0) target = $region49
    $region48: #{mlp_t_forward.1} parent=1 // pred_region
      %83 = dma.done [#allocation3], 1152
    $region49: #{mlp_t_forward.1} parent=1 // pred_fallthru
      _
    // Predicated region
    $region50: #{mlp_t_forward.1} parent=1 // pred_check
      _
    $region51: #{mlp_t_forward.1} parent=1 // pred_check_branch
      %85 = sbr.rel (0) target = $region53
    $region52: #{mlp_t_forward.1} parent=1 // pred_region
      %86 = dma.done [#allocation5], 4096
    $region53: #{mlp_t_forward.1} parent=1 // pred_fallthru
      _
    // Predicated region
    $region54: #{mlp_t_forward.1} parent=1 // pred_check
      _
    $region55: #{mlp_t_forward.1} parent=1 // pred_check_branch
      %88 = sbr.rel (0) target = $region57
    $region56: #{mlp_t_forward.1} parent=1 // pred_region
      %89 = dma.done [#allocation5], 4096
    $region57: #{mlp_t_forward.1} parent=1 // pred_fallthru
      _
    // Predicated region
    $region58: #{mlp_t_forward.1} parent=1 // pred_check
      _
    $region59: #{mlp_t_forward.1} parent=1 // pred_check_branch
      %91 = sbr.rel (0) target = $region61
    $region60: #{mlp_t_forward.1} parent=1 // pred_region
      %92 = dma.done [#allocation8], 4096
    $region61: #{mlp_t_forward.1} parent=1 // pred_fallthru
      _
    %v94 = vld [vmem:[%s0] sm:$0xff]
    %v95 = vld [vmem:[%s0 + $0x8] sm:$0xff]
    %v96 = vld [vmem:[%s0 + $0x10] sm:$0xff]
    %v97 = vld [vmem:[%s0 + $0x18] sm:$0xff]
    %v98 = vld [vmem:[%s0 + $0x20] sm:$0xff]
    %v99 = vld [vmem:[%s0 + $0x28] sm:$0xff]
    %v100 = vld [vmem:[%s0 + $0x30] sm:$0xff]
    %v101 = vld [vmem:[%s0 + $0x38] sm:$0xff]
    %v102 = vld [vmem:[%s0 + $0x40] sm:$0xff]
    %v103 = vld [vmem:[%s0 + $0x48] sm:$0xff]
    %v104 = vld [vmem:[%s0 + $0x50] sm:$0xff]
    %v105 = vld [vmem:[%s0 + $0x58] sm:$0xff]
    %v106 = vld [vmem:[%s0 + $0x60] sm:$0xff]
    %v107 = vld [vmem:[%s0 + $0x68] sm:$0xff]
    %v108 = vld [vmem:[%s0 + $0x70] sm:$0xff]
    %v109 = vld [vmem:[%s0 + $0x78] sm:$0xff]
    %v110 = vpack.c.bf16 %v95, %v94
    %v111 = vpack.c.bf16 %v97, %v96
    %v112 = vpack.c.bf16 %v99, %v98
    %v113 = vpack.c.bf16 %v101, %v100
    %v114 = vpack.c.bf16 %v103, %v102
    %v115 = vpack.c.bf16 %v105, %v104
    %v116 = vpack.c.bf16 %v107, %v106
    %v117 = vpack.c.bf16 %v109, %v108
    %v118 = vld [vmem:[#allocation2] sm:$0xff]
    %v119 = vld [vmem:[#allocation2 + $0x8] sm:$0xff]
    %v120 = vld [vmem:[#allocation2 + $0x10] sm:$0xff]
    %v121 = vld [vmem:[#allocation2 + $0x18] sm:$0xff]
    %v122 = vld [vmem:[#allocation2 + $0x20] sm:$0xff]
    %v123 = vld [vmem:[#allocation2 + $0x28] sm:$0xff]
    %v124 = vld [vmem:[#allocation2 + $0x30] sm:$0xff]
    %v125 = vld [vmem:[#allocation2 + $0x38] sm:$0xff]
    %v126 = vld [vmem:[#allocation2 + $0x40] sm:$0x11]
    %v127 = vld [vmem:[%s2] sm:$0x3]
    %v129 = vlaneseq
    %v130 = vshrl.u32 %v129, 7
    %v131 = vsub.s32 0, %v130
    %v132 = vrot.slane %v127, %v131
    %v133 = vlaneseq
    %v134 = vshrl.u32 %v133, 7
    %v135 = vsub.s32 1, %v134
    %v136 = vrot.slane %v127, %v135
    %v148 = vunpack.c.l.b16 %v118
    %v149 = vunpack.c.h.b16 %v118
    %v150 = vunpack.c.l.b16 %v119
    %v151 = vunpack.c.h.b16 %v119
    %v152 = vunpack.c.l.b16 %v120
    %v153 = vunpack.c.h.b16 %v120
    %v154 = vunpack.c.l.b16 %v121
    %v155 = vunpack.c.h.b16 %v121
    %v156 = vunpack.c.l.b16 %v122
    %v157 = vunpack.c.h.b16 %v122
    %v158 = vunpack.c.l.b16 %v123
    %v159 = vunpack.c.h.b16 %v123
    %v160 = vunpack.c.l.b16 %v124
    %v161 = vunpack.c.h.b16 %v124
    %v162 = vunpack.c.l.b16 %v125
    %v163 = vunpack.c.h.b16 %v125
    %v164 = vunpack.c.l.b16 %v126
    %v165 = vunpack.c.h.b16 %v126
    %v166 = vpack.c.b16 %v150, %v148
    %v167 = vpack.c.b16 %v151, %v149
    %v168 = vpack.c.b16 %v154, %v152
    %v169 = vpack.c.b16 %v155, %v153
    %v170 = vpack.c.b16 %v158, %v156
    %v171 = vpack.c.b16 %v159, %v157
    %v172 = vpack.c.b16 %v162, %v160
    %v173 = vpack.c.b16 %v163, %v161
    %v174 = vpack.c.b16 %v164, %v164
    %v175 = vpack.c.b16 %v165, %v165
    %vm184 = vcmask 539648
    %v186 = vsel %vm184, %v110, 0
    %v189 = vsel %vm184, %v111, 0
    %v192 = vsel %vm184, %v112, 0
    %v195 = vsel %vm184, %v113, 0
    %v198 = vsel %vm184, %v114, 0
    %v201 = vsel %vm184, %v115, 0
    %v204 = vsel %vm184, %v116, 0
    %v207 = vsel %vm184, %v117, 0
    %vm209 = vcmask 1040384
    %v211 = vsel %vm209, %v174, 0
    %v214 = vsel %vm209, %v175, 0
    %216 = vmatprep.subr.bf16.mxu0 %v167
    %217 = vmatpush1.bf16.msra.mxu0 %v166
    %218 = vmatprep.subr.bf16.mxu0 %v169
    %219 = vmatpush1.bf16.msra.mxu0 %v168
    %220 = vmatprep.subr.bf16.mxu0 %v171
    %221 = vmatpush1.bf16.msra.mxu0 %v170
    %222 = vmatprep.subr.bf16.mxu0 %v173
    %223 = vmatpush1.bf16.msra.mxu0 %v172
    %224 = vmatprep.subr.bf16.mxu0 %v214
    %225 = vmatpush1.bf16.msra.mxu0 %v211
    %226 = vmatprep.subr.bf16.mxu0 0
    %227 = vmatpush1.bf16.msra.mxu0 0
    %228 = vmatprep.subr.bf16.mxu0 0
    %229 = vmatpush1.bf16.msra.mxu0 0
    %230 = vmatprep.subr.bf16.mxu0 0
    %231 = vmatpush1.bf16.msra.mxu0 0
    %232 = vmatprep.subr.bf16.mxu0 0
    %233 = vmatpush1.bf16.msra.mxu0 0
    %234 = vmatprep.subr.bf16.mxu0 0
    %235 = vmatpush1.bf16.msra.mxu0 0
    %236 = vmatprep.subr.bf16.mxu0 0
    %237 = vmatpush1.bf16.msra.mxu0 0
    %238 = vmatprep.subr.bf16.mxu0 0
    %239 = vmatpush1.bf16.msra.mxu0 0
    %240 = vmatprep.subr.bf16.mxu0 0
    %241 = vmatpush1.bf16.msra.mxu0 0
    %242 = vmatprep.subr.bf16.mxu0 0
    %243 = vmatpush1.bf16.msra.mxu0 0
    %244 = vmatprep.subr.bf16.mxu0 0
    %245 = vmatpush1.bf16.msra.mxu0 0
    %246 = vmatprep.subr.bf16.mxu0 0
    %247 = vmatpush1.bf16.msra.mxu0 0
    %248 = vmatprep.mubr.bf16.mxu0 0
    %249 = vmatmul.mubr.bf16.gmra.mrb[0].mxu0 %v186
    %v250 = vpop.f32.mrb[0].mxu0
    %v251 = vadd.f32 %v132, %v250
    %v252 = vpop.f32.mrb[0].mxu0
    %v253 = vadd.f32 %v136, %v252
    %v254 = vpop.f32.mrb[0].mxu0
    %v255 = vadd.f32 %v132, %v254
    %v256 = vpop.f32.mrb[0].mxu0
    %v257 = vadd.f32 %v136, %v256
    %258 = vmatprep.mubr.bf16.mxu0 0
    %259 = vmatmul.mubr.bf16.gmra.mrb[0].mxu0 %v189
    %v260 = vpop.f32.mrb[0].mxu0
    %v261 = vadd.f32 %v132, %v260
    %v262 = vpop.f32.mrb[0].mxu0
    %v263 = vadd.f32 %v136, %v262
    %v264 = vpop.f32.mrb[0].mxu0
    %v265 = vadd.f32 %v132, %v264
    %v266 = vpop.f32.mrb[0].mxu0
    %v267 = vadd.f32 %v136, %v266
    %268 = vmatprep.mubr.bf16.mxu0 0
    %269 = vmatmul.mubr.bf16.gmra.mrb[0].mxu0 %v192
    %v270 = vpop.f32.mrb[0].mxu0
    %v271 = vadd.f32 %v132, %v270
    %v272 = vpop.f32.mrb[0].mxu0
    %v273 = vadd.f32 %v136, %v272
    %v274 = vpop.f32.mrb[0].mxu0
    %v275 = vadd.f32 %v132, %v274
    %v276 = vpop.f32.mrb[0].mxu0
    %v277 = vadd.f32 %v136, %v276
    %278 = vmatprep.mubr.bf16.mxu0 0
    %279 = vmatmul.mubr.bf16.gmra.mrb[0].mxu0 %v195
    %v280 = vpop.f32.mrb[0].mxu0
    %v281 = vadd.f32 %v132, %v280
    %v282 = vpop.f32.mrb[0].mxu0
    %v283 = vadd.f32 %v136, %v282
    %v284 = vpop.f32.mrb[0].mxu0
    %v285 = vadd.f32 %v132, %v284
    %v286 = vpop.f32.mrb[0].mxu0
    %v287 = vadd.f32 %v136, %v286
    %288 = vmatprep.mubr.bf16.mxu0 0
    %289 = vmatmul.mubr.bf16.gmra.mrb[0].mxu0 %v198
    %v290 = vpop.f32.mrb[0].mxu0
    %v291 = vadd.f32 %v132, %v290
    %v292 = vpop.f32.mrb[0].mxu0
    %v293 = vadd.f32 %v136, %v292
    %v294 = vpop.f32.mrb[0].mxu0
    %v295 = vadd.f32 %v132, %v294
    %v296 = vpop.f32.mrb[0].mxu0
    %v297 = vadd.f32 %v136, %v296
    %298 = vmatprep.mubr.bf16.mxu0 0
    %299 = vmatmul.mubr.bf16.gmra.mrb[0].mxu0 %v201
    %v300 = vpop.f32.mrb[0].mxu0
    %v301 = vadd.f32 %v132, %v300
    %v302 = vpop.f32.mrb[0].mxu0
    %v303 = vadd.f32 %v136, %v302
    %v304 = vpop.f32.mrb[0].mxu0
    %v305 = vadd.f32 %v132, %v304
    %v306 = vpop.f32.mrb[0].mxu0
    %v307 = vadd.f32 %v136, %v306
    %308 = vmatprep.mubr.bf16.mxu0 0
    %309 = vmatmul.mubr.bf16.gmra.mrb[0].mxu0 %v204
    %v310 = vpop.f32.mrb[0].mxu0
    %v311 = vadd.f32 %v132, %v310
    %v312 = vpop.f32.mrb[0].mxu0
    %v313 = vadd.f32 %v136, %v312
    %v314 = vpop.f32.mrb[0].mxu0
    %v315 = vadd.f32 %v132, %v314
    %v316 = vpop.f32.mrb[0].mxu0
    %v317 = vadd.f32 %v136, %v316
    %318 = vmatprep.mubr.bf16.mxu0 0
    %319 = vmatmul.mubr.bf16.gmra.mrb[0].mxu0 %v207
    %v320 = vpop.f32.mrb[0].mxu0
    %v321 = vadd.f32 %v132, %v320
    %v322 = vpop.f32.mrb[0].mxu0
    %v323 = vadd.f32 %v136, %v322
    %v324 = vpop.f32.mrb[0].mxu0
    %v325 = vadd.f32 %v132, %v324
    %v326 = vpop.f32.mrb[0].mxu0
    %v327 = vadd.f32 %v136, %v326
    %328 = vdwg.mxu0
    %v329 = vmax.f32 %v251, 0.0
    %v330 = vmax.f32 %v253, 0.0
    %v331 = vmax.f32 %v255, 0.0
    %v332 = vmax.f32 %v257, 0.0
    %v333 = vmax.f32 %v261, 0.0
    %v334 = vmax.f32 %v263, 0.0
    %v335 = vmax.f32 %v265, 0.0
    %v336 = vmax.f32 %v267, 0.0
    %v337 = vmax.f32 %v271, 0.0
    %v338 = vmax.f32 %v273, 0.0
    %v339 = vmax.f32 %v275, 0.0
    %v340 = vmax.f32 %v277, 0.0
    %v341 = vmax.f32 %v281, 0.0
    %v342 = vmax.f32 %v283, 0.0
    %v343 = vmax.f32 %v285, 0.0
    %v344 = vmax.f32 %v287, 0.0
    %v345 = vmax.f32 %v291, 0.0
    %v346 = vmax.f32 %v293, 0.0
    %v347 = vmax.f32 %v295, 0.0
    %v348 = vmax.f32 %v297, 0.0
    %v349 = vmax.f32 %v301, 0.0
    %v350 = vmax.f32 %v303, 0.0
    %v351 = vmax.f32 %v305, 0.0
    %v352 = vmax.f32 %v307, 0.0
    %v353 = vmax.f32 %v311, 0.0
    %v354 = vmax.f32 %v313, 0.0
    %v355 = vmax.f32 %v315, 0.0
    %v356 = vmax.f32 %v317, 0.0
    %v357 = vmax.f32 %v321, 0.0
    %v358 = vmax.f32 %v323, 0.0
    %v359 = vmax.f32 %v325, 0.0
    %v360 = vmax.f32 %v327, 0.0
    %v361 = vpack.c.bf16 %v331, %v329
    %v362 = vpack.c.bf16 %v332, %v330
    %v363 = vpack.c.bf16 %v335, %v333
    %v364 = vpack.c.bf16 %v336, %v334
    %v365 = vpack.c.bf16 %v339, %v337
    %v366 = vpack.c.bf16 %v340, %v338
    %v367 = vpack.c.bf16 %v343, %v341
    %v368 = vpack.c.bf16 %v344, %v342
    %v369 = vpack.c.bf16 %v347, %v345
    %v370 = vpack.c.bf16 %v348, %v346
    %v371 = vpack.c.bf16 %v351, %v349
    %v372 = vpack.c.bf16 %v352, %v350
    %v373 = vpack.c.bf16 %v355, %v353
    %v374 = vpack.c.bf16 %v356, %v354
    %v375 = vpack.c.bf16 %v359, %v357
    %v376 = vpack.c.bf16 %v360, %v358
    %v377 = vld [vmem:[#allocation4] sm:$0xff]
    %v378 = vld [vmem:[#allocation4 + $0x8] sm:$0xff]
    %v379 = vld [vmem:[#allocation4 + $0x10] sm:$0xff]
    %v380 = vld [vmem:[#allocation4 + $0x18] sm:$0xff]
    %v381 = vld [vmem:[#allocation4 + $0x20] sm:$0xff]
    %v382 = vld [vmem:[#allocation4 + $0x28] sm:$0xff]
    %v383 = vld [vmem:[#allocation4 + $0x30] sm:$0xff]
    %v384 = vld [vmem:[#allocation4 + $0x38] sm:$0xff]
    %v385 = vld [vmem:[#allocation4 + $0x40] sm:$0xff]
    %v386 = vld [vmem:[#allocation4 + $0x48] sm:$0xff]
    %v387 = vld [vmem:[#allocation4 + $0x50] sm:$0xff]
    %v388 = vld [vmem:[#allocation4 + $0x58] sm:$0xff]
    %v389 = vld [vmem:[#allocation4 + $0x60] sm:$0xff]
    %v390 = vld [vmem:[#allocation4 + $0x68] sm:$0xff]
    %v391 = vld [vmem:[#allocation4 + $0x70] sm:$0xff]
    %v392 = vld [vmem:[#allocation4 + $0x78] sm:$0xff]
    %v393 = vld [vmem:[#allocation4 + $0x80] sm:$0xff]
    %v394 = vld [vmem:[#allocation4 + $0x88] sm:$0xff]
    %v395 = vld [vmem:[#allocation4 + $0x90] sm:$0xff]
    %v396 = vld [vmem:[#allocation4 + $0x98] sm:$0xff]
    %v397 = vld [vmem:[#allocation4 + $0xa0] sm:$0xff]
    %v398 = vld [vmem:[#allocation4 + $0xa8] sm:$0xff]
    %v399 = vld [vmem:[#allocation4 + $0xb0] sm:$0xff]
    %v400 = vld [vmem:[#allocation4 + $0xb8] sm:$0xff]
    %v401 = vld [vmem:[#allocation4 + $0xc0] sm:$0xff]
    %v402 = vld [vmem:[#allocation4 + $0xc8] sm:$0xff]
    %v403 = vld [vmem:[#allocation4 + $0xd0] sm:$0xff]
    %v404 = vld [vmem:[#allocation4 + $0xd8] sm:$0xff]
    %v405 = vld [vmem:[#allocation4 + $0xe0] sm:$0xff]
    %v406 = vld [vmem:[#allocation4 + $0xe8] sm:$0xff]
    %v407 = vld [vmem:[#allocation4 + $0xf0] sm:$0xff]
    %v408 = vld [vmem:[#allocation4 + $0xf8] sm:$0xff]
    %v409 = vld [vmem:[%s4] sm:$0x3]
    %v411 = vlaneseq
    %v412 = vshrl.u32 %v411, 7
    %v413 = vsub.s32 0, %v412
    %v414 = vrot.slane %v409, %v413
    %v415 = vlaneseq
    %v416 = vshrl.u32 %v415, 7
    %v417 = vsub.s32 1, %v416
    %v418 = vrot.slane %v409, %v417
    %v453 = vunpack.c.l.b16 %v377
    %v454 = vunpack.c.h.b16 %v377
    %v455 = vunpack.c.l.b16 %v378
    %v456 = vunpack.c.h.b16 %v378
    %v457 = vunpack.c.l.b16 %v379
    %v458 = vunpack.c.h.b16 %v379
    %v459 = vunpack.c.l.b16 %v380
    %v460 = vunpack.c.h.b16 %v380
    %v461 = vunpack.c.l.b16 %v381
    %v462 = vunpack.c.h.b16 %v381
    %v463 = vunpack.c.l.b16 %v382
    %v464 = vunpack.c.h.b16 %v382
    %v465 = vunpack.c.l.b16 %v383
    %v466 = vunpack.c.h.b16 %v383
    %v467 = vunpack.c.l.b16 %v384
    %v468 = vunpack.c.h.b16 %v384
    %v469 = vunpack.c.l.b16 %v385
    %v470 = vunpack.c.h.b16 %v385
    %v471 = vunpack.c.l.b16 %v386
    %v472 = vunpack.c.h.b16 %v386
    %v473 = vunpack.c.l.b16 %v387
    %v474 = vunpack.c.h.b16 %v387
    %v475 = vunpack.c.l.b16 %v388
    %v476 = vunpack.c.h.b16 %v388
    %v477 = vunpack.c.l.b16 %v389
    %v478 = vunpack.c.h.b16 %v389
    %v479 = vunpack.c.l.b16 %v390
    %v480 = vunpack.c.h.b16 %v390
    %v481 = vunpack.c.l.b16 %v391
    %v482 = vunpack.c.h.b16 %v391
    %v483 = vunpack.c.l.b16 %v392
    %v484 = vunpack.c.h.b16 %v392
    %v485 = vunpack.c.l.b16 %v393
    %v486 = vunpack.c.h.b16 %v393
    %v487 = vunpack.c.l.b16 %v394
    %v488 = vunpack.c.h.b16 %v394
    %v489 = vunpack.c.l.b16 %v395
    %v490 = vunpack.c.h.b16 %v395
    %v491 = vunpack.c.l.b16 %v396
    %v492 = vunpack.c.h.b16 %v396
    %v493 = vunpack.c.l.b16 %v397
    %v494 = vunpack.c.h.b16 %v397
    %v495 = vunpack.c.l.b16 %v398
    %v496 = vunpack.c.h.b16 %v398
    %v497 = vunpack.c.l.b16 %v399
    %v498 = vunpack.c.h.b16 %v399
    %v499 = vunpack.c.l.b16 %v400
    %v500 = vunpack.c.h.b16 %v400
    %v501 = vunpack.c.l.b16 %v401
    %v502 = vunpack.c.h.b16 %v401
    %v503 = vunpack.c.l.b16 %v402
    %v504 = vunpack.c.h.b16 %v402
    %v505 = vunpack.c.l.b16 %v403
    %v506 = vunpack.c.h.b16 %v403
    %v507 = vunpack.c.l.b16 %v404
    %v508 = vunpack.c.h.b16 %v404
    %v509 = vunpack.c.l.b16 %v405
    %v510 = vunpack.c.h.b16 %v405
    %v511 = vunpack.c.l.b16 %v406
    %v512 = vunpack.c.h.b16 %v406
    %v513 = vunpack.c.l.b16 %v407
    %v514 = vunpack.c.h.b16 %v407
    %v515 = vunpack.c.l.b16 %v408
    %v516 = vunpack.c.h.b16 %v408
    %v517 = vpack.c.b16 %v455, %v453
    %v518 = vpack.c.b16 %v456, %v454
    %v519 = vpack.c.b16 %v459, %v457
    %v520 = vpack.c.b16 %v460, %v458
    %v521 = vpack.c.b16 %v463, %v461
    %v522 = vpack.c.b16 %v464, %v462
    %v523 = vpack.c.b16 %v467, %v465
    %v524 = vpack.c.b16 %v468, %v466
    %v525 = vpack.c.b16 %v471, %v469
    %v526 = vpack.c.b16 %v472, %v470
    %v527 = vpack.c.b16 %v475, %v473
    %v528 = vpack.c.b16 %v476, %v474
    %v529 = vpack.c.b16 %v479, %v477
    %v530 = vpack.c.b16 %v480, %v478
    %v531 = vpack.c.b16 %v483, %v481
    %v532 = vpack.c.b16 %v484, %v482
    %v533 = vpack.c.b16 %v487, %v485
    %v534 = vpack.c.b16 %v488, %v486
    %v535 = vpack.c.b16 %v491, %v489
    %v536 = vpack.c.b16 %v492, %v490
    %v537 = vpack.c.b16 %v495, %v493
    %v538 = vpack.c.b16 %v496, %v494
    %v539 = vpack.c.b16 %v499, %v497
    %v540 = vpack.c.b16 %v500, %v498
    %v541 = vpack.c.b16 %v503, %v501
    %v542 = vpack.c.b16 %v504, %v502
    %v543 = vpack.c.b16 %v507, %v505
    %v544 = vpack.c.b16 %v508, %v506
    %v545 = vpack.c.b16 %v511, %v509
    %v546 = vpack.c.b16 %v512, %v510
    %v547 = vpack.c.b16 %v515, %v513
    %v548 = vpack.c.b16 %v516, %v514
    %581 = vmatprep.subr.bf16.mxu0 %v518
    %582 = vmatpush1.bf16.msra.mxu0 %v517
    %583 = vmatprep.subr.bf16.mxu0 %v520
    %584 = vmatpush1.bf16.msra.mxu0 %v519
    %585 = vmatprep.subr.bf16.mxu0 %v522
    %586 = vmatpush1.bf16.msra.mxu0 %v521
    %587 = vmatprep.subr.bf16.mxu0 %v524
    %588 = vmatpush1.bf16.msra.mxu0 %v523
    %589 = vmatprep.subr.bf16.mxu0 %v526
    %590 = vmatpush1.bf16.msra.mxu0 %v525
    %591 = vmatprep.subr.bf16.mxu0 %v528
    %592 = vmatpush1.bf16.msra.mxu0 %v527
    %593 = vmatprep.subr.bf16.mxu0 %v530
    %594 = vmatpush1.bf16.msra.mxu0 %v529
    %595 = vmatprep.subr.bf16.mxu0 %v532
    %596 = vmatpush1.bf16.msra.mxu0 %v531
    %597 = vmatprep.subr.bf16.mxu0 %v534
    %598 = vmatpush1.bf16.msra.mxu0 %v533
    %599 = vmatprep.subr.bf16.mxu0 %v536
    %600 = vmatpush1.bf16.msra.mxu0 %v535
    %601 = vmatprep.subr.bf16.mxu0 %v538
    %602 = vmatpush1.bf16.msra.mxu0 %v537
    %603 = vmatprep.subr.bf16.mxu0 %v540
    %604 = vmatpush1.bf16.msra.mxu0 %v539
    %605 = vmatprep.subr.bf16.mxu0 %v542
    %606 = vmatpush1.bf16.msra.mxu0 %v541
    %607 = vmatprep.subr.bf16.mxu0 %v544
    %608 = vmatpush1.bf16.msra.mxu0 %v543
    %609 = vmatprep.subr.bf16.mxu0 %v546
    %610 = vmatpush1.bf16.msra.mxu0 %v545
    %611 = vmatprep.subr.bf16.mxu0 %v548
    %612 = vmatpush1.bf16.msra.mxu0 %v547
    %613 = vmatprep.mubr.bf16.mxu0 %v362
    %614 = vmatmul.mubr.bf16.gmra.mrb[0].mxu0 %v361
    %v615 = vpop.f32.mrb[0].mxu0
    %v616 = vadd.f32 %v414, %v615
    %v617 = vpop.f32.mrb[0].mxu0
    %v618 = vadd.f32 %v418, %v617
    %v619 = vpop.f32.mrb[0].mxu0
    %v620 = vadd.f32 %v414, %v619
    %v621 = vpop.f32.mrb[0].mxu0
    %v622 = vadd.f32 %v418, %v621
    %623 = vmatprep.mubr.bf16.mxu0 %v364
    %624 = vmatmul.mubr.bf16.gmra.mrb[0].mxu0 %v363
    %v625 = vpop.f32.mrb[0].mxu0
    %v626 = vadd.f32 %v414, %v625
    %v627 = vpop.f32.mrb[0].mxu0
    %v628 = vadd.f32 %v418, %v627
    %v629 = vpop.f32.mrb[0].mxu0
    %v630 = vadd.f32 %v414, %v629
    %v631 = vpop.f32.mrb[0].mxu0
    %v632 = vadd.f32 %v418, %v631
    %633 = vmatprep.mubr.bf16.mxu0 %v366
    %634 = vmatmul.mubr.bf16.gmra.mrb[0].mxu0 %v365
    %v635 = vpop.f32.mrb[0].mxu0
    %v636 = vadd.f32 %v414, %v635
    %v637 = vpop.f32.mrb[0].mxu0
    %v638 = vadd.f32 %v418, %v637
    %v639 = vpop.f32.mrb[0].mxu0
    %v640 = vadd.f32 %v414, %v639
    %v641 = vpop.f32.mrb[0].mxu0
    %v642 = vadd.f32 %v418, %v641
    %643 = vmatprep.mubr.bf16.mxu0 %v368
    %644 = vmatmul.mubr.bf16.gmra.mrb[0].mxu0 %v367
    %v645 = vpop.f32.mrb[0].mxu0
    %v646 = vadd.f32 %v414, %v645
    %v647 = vpop.f32.mrb[0].mxu0
    %v648 = vadd.f32 %v418, %v647
    %v649 = vpop.f32.mrb[0].mxu0
    %v650 = vadd.f32 %v414, %v649
    %v651 = vpop.f32.mrb[0].mxu0
    %v652 = vadd.f32 %v418, %v651
    %653 = vmatprep.mubr.bf16.mxu0 %v370
    %654 = vmatmul.mubr.bf16.gmra.mrb[0].mxu0 %v369
    %v655 = vpop.f32.mrb[0].mxu0
    %v656 = vadd.f32 %v414, %v655
    %v657 = vpop.f32.mrb[0].mxu0
    %v658 = vadd.f32 %v418, %v657
    %v659 = vpop.f32.mrb[0].mxu0
    %v660 = vadd.f32 %v414, %v659
    %v661 = vpop.f32.mrb[0].mxu0
    %v662 = vadd.f32 %v418, %v661
    %663 = vmatprep.mubr.bf16.mxu0 %v372
    %664 = vmatmul.mubr.bf16.gmra.mrb[0].mxu0 %v371
    %v665 = vpop.f32.mrb[0].mxu0
    %v666 = vadd.f32 %v414, %v665
    %v667 = vpop.f32.mrb[0].mxu0
    %v668 = vadd.f32 %v418, %v667
    %v669 = vpop.f32.mrb[0].mxu0
    %v670 = vadd.f32 %v414, %v669
    %v671 = vpop.f32.mrb[0].mxu0
    %v672 = vadd.f32 %v418, %v671
    %673 = vmatprep.mubr.bf16.mxu0 %v374
    %674 = vmatmul.mubr.bf16.gmra.mrb[0].mxu0 %v373
    %v675 = vpop.f32.mrb[0].mxu0
    %v676 = vadd.f32 %v414, %v675
    %v677 = vpop.f32.mrb[0].mxu0
    %v678 = vadd.f32 %v418, %v677
    %v679 = vpop.f32.mrb[0].mxu0
    %v680 = vadd.f32 %v414, %v679
    %v681 = vpop.f32.mrb[0].mxu0
    %v682 = vadd.f32 %v418, %v681
    %683 = vmatprep.mubr.bf16.mxu0 %v376
    %684 = vmatmul.mubr.bf16.gmra.mrb[0].mxu0 %v375
    %v685 = vpop.f32.mrb[0].mxu0
    %v686 = vadd.f32 %v414, %v685
    %v687 = vpop.f32.mrb[0].mxu0
    %v688 = vadd.f32 %v418, %v687
    %v689 = vpop.f32.mrb[0].mxu0
    %v690 = vadd.f32 %v414, %v689
    %v691 = vpop.f32.mrb[0].mxu0
    %v692 = vadd.f32 %v418, %v691
    %693 = vdwg.mxu0
    %v694 = vmax.f32 %v616, 0.0
    %v695 = vmax.f32 %v618, 0.0
    %v696 = vmax.f32 %v620, 0.0
    %v697 = vmax.f32 %v622, 0.0
    %v698 = vmax.f32 %v626, 0.0
    %v699 = vmax.f32 %v628, 0.0
    %v700 = vmax.f32 %v630, 0.0
    %v701 = vmax.f32 %v632, 0.0
    %v702 = vmax.f32 %v636, 0.0
    %v703 = vmax.f32 %v638, 0.0
    %v704 = vmax.f32 %v640, 0.0
    %v705 = vmax.f32 %v642, 0.0
    %v706 = vmax.f32 %v646, 0.0
    %v707 = vmax.f32 %v648, 0.0
    %v708 = vmax.f32 %v650, 0.0
    %v709 = vmax.f32 %v652, 0.0
    %v710 = vmax.f32 %v656, 0.0
    %v711 = vmax.f32 %v658, 0.0
    %v712 = vmax.f32 %v660, 0.0
    %v713 = vmax.f32 %v662, 0.0
    %v714 = vmax.f32 %v666, 0.0
    %v715 = vmax.f32 %v668, 0.0
    %v716 = vmax.f32 %v670, 0.0
    %v717 = vmax.f32 %v672, 0.0
    %v718 = vmax.f32 %v676, 0.0
    %v719 = vmax.f32 %v678, 0.0
    %v720 = vmax.f32 %v680, 0.0
    %v721 = vmax.f32 %v682, 0.0
    %v722 = vmax.f32 %v686, 0.0
    %v723 = vmax.f32 %v688, 0.0
    %v724 = vmax.f32 %v690, 0.0
    %v725 = vmax.f32 %v692, 0.0
    %v726 = vpack.c.bf16 %v696, %v694
    %v727 = vpack.c.bf16 %v697, %v695
    %v728 = vpack.c.bf16 %v700, %v698
    %v729 = vpack.c.bf16 %v701, %v699
    %v730 = vpack.c.bf16 %v704, %v702
    %v731 = vpack.c.bf16 %v705, %v703
    %v732 = vpack.c.bf16 %v708, %v706
    %v733 = vpack.c.bf16 %v709, %v707
    %v734 = vpack.c.bf16 %v712, %v710
    %v735 = vpack.c.bf16 %v713, %v711
    %v736 = vpack.c.bf16 %v716, %v714
    %v737 = vpack.c.bf16 %v717, %v715
    %v738 = vpack.c.bf16 %v720, %v718
    %v739 = vpack.c.bf16 %v721, %v719
    %v740 = vpack.c.bf16 %v724, %v722
    %v741 = vpack.c.bf16 %v725, %v723
    %v742 = vld [vmem:[#allocation6] sm:$0xff]
    %v743 = vld [vmem:[#allocation6 + $0x8] sm:$0xff]
    %v744 = vld [vmem:[#allocation6 + $0x10] sm:$0xff]
    %v745 = vld [vmem:[#allocation6 + $0x18] sm:$0xff]
    %v746 = vld [vmem:[#allocation6 + $0x20] sm:$0xff]
    %v747 = vld [vmem:[#allocation6 + $0x28] sm:$0xff]
    %v748 = vld [vmem:[#allocation6 + $0x30] sm:$0xff]
    %v749 = vld [vmem:[#allocation6 + $0x38] sm:$0xff]
    %v750 = vld [vmem:[#allocation6 + $0x40] sm:$0xff]
    %v751 = vld [vmem:[#allocation6 + $0x48] sm:$0xff]
    %v752 = vld [vmem:[#allocation6 + $0x50] sm:$0xff]
    %v753 = vld [vmem:[#allocation6 + $0x58] sm:$0xff]
    %v754 = vld [vmem:[#allocation6 + $0x60] sm:$0xff]
    %v755 = vld [vmem:[#allocation6 + $0x68] sm:$0xff]
    %v756 = vld [vmem:[#allocation6 + $0x70] sm:$0xff]
    %v757 = vld [vmem:[#allocation6 + $0x78] sm:$0xff]
    %v758 = vld [vmem:[#allocation6 + $0x80] sm:$0xff]
    %v759 = vld [vmem:[#allocation6 + $0x88] sm:$0xff]
    %v760 = vld [vmem:[#allocation6 + $0x90] sm:$0xff]
    %v761 = vld [vmem:[#allocation6 + $0x98] sm:$0xff]
    %v762 = vld [vmem:[#allocation6 + $0xa0] sm:$0xff]
    %v763 = vld [vmem:[#allocation6 + $0xa8] sm:$0xff]
    %v764 = vld [vmem:[#allocation6 + $0xb0] sm:$0xff]
    %v765 = vld [vmem:[#allocation6 + $0xb8] sm:$0xff]
    %v766 = vld [vmem:[#allocation6 + $0xc0] sm:$0xff]
    %v767 = vld [vmem:[#allocation6 + $0xc8] sm:$0xff]
    %v768 = vld [vmem:[#allocation6 + $0xd0] sm:$0xff]
    %v769 = vld [vmem:[#allocation6 + $0xd8] sm:$0xff]
    %v770 = vld [vmem:[#allocation6 + $0xe0] sm:$0xff]
    %v771 = vld [vmem:[#allocation6 + $0xe8] sm:$0xff]
    %v772 = vld [vmem:[#allocation6 + $0xf0] sm:$0xff]
    %v773 = vld [vmem:[#allocation6 + $0xf8] sm:$0xff]
    %v774 = vld [vmem:[%s6] sm:$0x3]
    %v776 = vlaneseq
    %v777 = vshrl.u32 %v776, 7
    %v778 = vsub.s32 0, %v777
    %v779 = vrot.slane %v774, %v778
    %v780 = vlaneseq
    %v781 = vshrl.u32 %v780, 7
    %v782 = vsub.s32 1, %v781
    %v783 = vrot.slane %v774, %v782
    %v818 = vunpack.c.l.b16 %v742
    %v819 = vunpack.c.h.b16 %v742
    %v820 = vunpack.c.l.b16 %v743
    %v821 = vunpack.c.h.b16 %v743
    %v822 = vunpack.c.l.b16 %v744
    %v823 = vunpack.c.h.b16 %v744
    %v824 = vunpack.c.l.b16 %v745
    %v825 = vunpack.c.h.b16 %v745
    %v826 = vunpack.c.l.b16 %v746
    %v827 = vunpack.c.h.b16 %v746
    %v828 = vunpack.c.l.b16 %v747
    %v829 = vunpack.c.h.b16 %v747
    %v830 = vunpack.c.l.b16 %v748
    %v831 = vunpack.c.h.b16 %v748
    %v832 = vunpack.c.l.b16 %v749
    %v833 = vunpack.c.h.b16 %v749
    %v834 = vunpack.c.l.b16 %v750
    %v835 = vunpack.c.h.b16 %v750
    %v836 = vunpack.c.l.b16 %v751
    %v837 = vunpack.c.h.b16 %v751
    %v838 = vunpack.c.l.b16 %v752
    %v839 = vunpack.c.h.b16 %v752
    %v840 = vunpack.c.l.b16 %v753
    %v841 = vunpack.c.h.b16 %v753
    %v842 = vunpack.c.l.b16 %v754
    %v843 = vunpack.c.h.b16 %v754
    %v844 = vunpack.c.l.b16 %v755
    %v845 = vunpack.c.h.b16 %v755
    %v846 = vunpack.c.l.b16 %v756
    %v847 = vunpack.c.h.b16 %v756
    %v848 = vunpack.c.l.b16 %v757
    %v849 = vunpack.c.h.b16 %v757
    %v850 = vunpack.c.l.b16 %v758
    %v851 = vunpack.c.h.b16 %v758
    %v852 = vunpack.c.l.b16 %v759
    %v853 = vunpack.c.h.b16 %v759
    %v854 = vunpack.c.l.b16 %v760
    %v855 = vunpack.c.h.b16 %v760
    %v856 = vunpack.c.l.b16 %v761
    %v857 = vunpack.c.h.b16 %v761
    %v858 = vunpack.c.l.b16 %v762
    %v859 = vunpack.c.h.b16 %v762
    %v860 = vunpack.c.l.b16 %v763
    %v861 = vunpack.c.h.b16 %v763
    %v862 = vunpack.c.l.b16 %v764
    %v863 = vunpack.c.h.b16 %v764
    %v864 = vunpack.c.l.b16 %v765
    %v865 = vunpack.c.h.b16 %v765
    %v866 = vunpack.c.l.b16 %v766
    %v867 = vunpack.c.h.b16 %v766
    %v868 = vunpack.c.l.b16 %v767
    %v869 = vunpack.c.h.b16 %v767
    %v870 = vunpack.c.l.b16 %v768
    %v871 = vunpack.c.h.b16 %v768
    %v872 = vunpack.c.l.b16 %v769
    %v873 = vunpack.c.h.b16 %v769
    %v874 = vunpack.c.l.b16 %v770
    %v875 = vunpack.c.h.b16 %v770
    %v876 = vunpack.c.l.b16 %v771
    %v877 = vunpack.c.h.b16 %v771
    %v878 = vunpack.c.l.b16 %v772
    %v879 = vunpack.c.h.b16 %v772
    %v880 = vunpack.c.l.b16 %v773
    %v881 = vunpack.c.h.b16 %v773
    %v882 = vpack.c.b16 %v820, %v818
    %v883 = vpack.c.b16 %v821, %v819
    %v884 = vpack.c.b16 %v824, %v822
    %v885 = vpack.c.b16 %v825, %v823
    %v886 = vpack.c.b16 %v828, %v826
    %v887 = vpack.c.b16 %v829, %v827
    %v888 = vpack.c.b16 %v832, %v830
    %v889 = vpack.c.b16 %v833, %v831
    %v890 = vpack.c.b16 %v836, %v834
    %v891 = vpack.c.b16 %v837, %v835
    %v892 = vpack.c.b16 %v840, %v838
    %v893 = vpack.c.b16 %v841, %v839
    %v894 = vpack.c.b16 %v844, %v842
    %v895 = vpack.c.b16 %v845, %v843
    %v896 = vpack.c.b16 %v848, %v846
    %v897 = vpack.c.b16 %v849, %v847
    %v898 = vpack.c.b16 %v852, %v850
    %v899 = vpack.c.b16 %v853, %v851
    %v900 = vpack.c.b16 %v856, %v854
    %v901 = vpack.c.b16 %v857, %v855
    %v902 = vpack.c.b16 %v860, %v858
    %v903 = vpack.c.b16 %v861, %v859
    %v904 = vpack.c.b16 %v864, %v862
    %v905 = vpack.c.b16 %v865, %v863
    %v906 = vpack.c.b16 %v868, %v866
    %v907 = vpack.c.b16 %v869, %v867
    %v908 = vpack.c.b16 %v872, %v870
    %v909 = vpack.c.b16 %v873, %v871
    %v910 = vpack.c.b16 %v876, %v874
    %v911 = vpack.c.b16 %v877, %v875
    %v912 = vpack.c.b16 %v880, %v878
    %v913 = vpack.c.b16 %v881, %v879
    %946 = vmatprep.subr.bf16.mxu0 %v883
    %947 = vmatpush1.bf16.msra.mxu0 %v882
    %948 = vmatprep.subr.bf16.mxu0 %v885
    %949 = vmatpush1.bf16.msra.mxu0 %v884
    %950 = vmatprep.subr.bf16.mxu0 %v887
    %951 = vmatpush1.bf16.msra.mxu0 %v886
    %952 = vmatprep.subr.bf16.mxu0 %v889
    %953 = vmatpush1.bf16.msra.mxu0 %v888
    %954 = vmatprep.subr.bf16.mxu0 %v891
    %955 = vmatpush1.bf16.msra.mxu0 %v890
    %956 = vmatprep.subr.bf16.mxu0 %v893
    %957 = vmatpush1.bf16.msra.mxu0 %v892
    %958 = vmatprep.subr.bf16.mxu0 %v895
    %959 = vmatpush1.bf16.msra.mxu0 %v894
    %960 = vmatprep.subr.bf16.mxu0 %v897
    %961 = vmatpush1.bf16.msra.mxu0 %v896
    %962 = vmatprep.subr.bf16.mxu0 %v899
    %963 = vmatpush1.bf16.msra.mxu0 %v898
    %964 = vmatprep.subr.bf16.mxu0 %v901
    %965 = vmatpush1.bf16.msra.mxu0 %v900
    %966 = vmatprep.subr.bf16.mxu0 %v903
    %967 = vmatpush1.bf16.msra.mxu0 %v902
    %968 = vmatprep.subr.bf16.mxu0 %v905
    %969 = vmatpush1.bf16.msra.mxu0 %v904
    %970 = vmatprep.subr.bf16.mxu0 %v907
    %971 = vmatpush1.bf16.msra.mxu0 %v906
    %972 = vmatprep.subr.bf16.mxu0 %v909
    %973 = vmatpush1.bf16.msra.mxu0 %v908
    %974 = vmatprep.subr.bf16.mxu0 %v911
    %975 = vmatpush1.bf16.msra.mxu0 %v910
    %976 = vmatprep.subr.bf16.mxu0 %v913
    %977 = vmatpush1.bf16.msra.mxu0 %v912
    %978 = vmatprep.mubr.bf16.mxu0 %v727
    %979 = vmatmul.mubr.bf16.gmra.mrb[0].mxu0 %v726
    %v980 = vpop.f32.mrb[0].mxu0
    %v981 = vadd.f32 %v779, %v980
    %v982 = vpop.f32.mrb[0].mxu0
    %v983 = vadd.f32 %v783, %v982
    %v984 = vpop.f32.mrb[0].mxu0
    %v985 = vadd.f32 %v779, %v984
    %v986 = vpop.f32.mrb[0].mxu0
    %v987 = vadd.f32 %v783, %v986
    %988 = vmatprep.mubr.bf16.mxu0 %v729
    %989 = vmatmul.mubr.bf16.gmra.mrb[0].mxu0 %v728
    %v990 = vpop.f32.mrb[0].mxu0
    %v991 = vadd.f32 %v779, %v990
    %v992 = vpop.f32.mrb[0].mxu0
    %v993 = vadd.f32 %v783, %v992
    %v994 = vpop.f32.mrb[0].mxu0
    %v995 = vadd.f32 %v779, %v994
    %v996 = vpop.f32.mrb[0].mxu0
    %v997 = vadd.f32 %v783, %v996
    %998 = vmatprep.mubr.bf16.mxu0 %v731
    %999 = vmatmul.mubr.bf16.gmra.mrb[0].mxu0 %v730
    %v1000 = vpop.f32.mrb[0].mxu0
    %v1001 = vadd.f32 %v779, %v1000
    %v1002 = vpop.f32.mrb[0].mxu0
    %v1003 = vadd.f32 %v783, %v1002
    %v1004 = vpop.f32.mrb[0].mxu0
    %v1005 = vadd.f32 %v779, %v1004
    %v1006 = vpop.f32.mrb[0].mxu0
    %v1007 = vadd.f32 %v783, %v1006
    %1008 = vmatprep.mubr.bf16.mxu0 %v733
    %1009 = vmatmul.mubr.bf16.gmra.mrb[0].mxu0 %v732
    %v1010 = vpop.f32.mrb[0].mxu0
    %v1011 = vadd.f32 %v779, %v1010
    %v1012 = vpop.f32.mrb[0].mxu0
    %v1013 = vadd.f32 %v783, %v1012
    %v1014 = vpop.f32.mrb[0].mxu0
    %v1015 = vadd.f32 %v779, %v1014
    %v1016 = vpop.f32.mrb[0].mxu0
    %v1017 = vadd.f32 %v783, %v1016
    %1018 = vmatprep.mubr.bf16.mxu0 %v735
    %1019 = vmatmul.mubr.bf16.gmra.mrb[0].mxu0 %v734
    %v1020 = vpop.f32.mrb[0].mxu0
    %v1021 = vadd.f32 %v779, %v1020
    %v1022 = vpop.f32.mrb[0].mxu0
    %v1023 = vadd.f32 %v783, %v1022
    %v1024 = vpop.f32.mrb[0].mxu0
    %v1025 = vadd.f32 %v779, %v1024
    %v1026 = vpop.f32.mrb[0].mxu0
    %v1027 = vadd.f32 %v783, %v1026
    %1028 = vmatprep.mubr.bf16.mxu0 %v737
    %1029 = vmatmul.mubr.bf16.gmra.mrb[0].mxu0 %v736
    %v1030 = vpop.f32.mrb[0].mxu0
    %v1031 = vadd.f32 %v779, %v1030
    %v1032 = vpop.f32.mrb[0].mxu0
    %v1033 = vadd.f32 %v783, %v1032
    %v1034 = vpop.f32.mrb[0].mxu0
    %v1035 = vadd.f32 %v779, %v1034
    %v1036 = vpop.f32.mrb[0].mxu0
    %v1037 = vadd.f32 %v783, %v1036
    %1038 = vmatprep.mubr.bf16.mxu0 %v739
    %1039 = vmatmul.mubr.bf16.gmra.mrb[0].mxu0 %v738
    %v1040 = vpop.f32.mrb[0].mxu0
    %v1041 = vadd.f32 %v779, %v1040
    %v1042 = vpop.f32.mrb[0].mxu0
    %v1043 = vadd.f32 %v783, %v1042
    %v1044 = vpop.f32.mrb[0].mxu0
    %v1045 = vadd.f32 %v779, %v1044
    %v1046 = vpop.f32.mrb[0].mxu0
    %v1047 = vadd.f32 %v783, %v1046
    %1048 = vmatprep.mubr.bf16.mxu0 %v741
    %1049 = vmatmul.mubr.bf16.gmra.mrb[0].mxu0 %v740
    %v1050 = vpop.f32.mrb[0].mxu0
    %v1051 = vadd.f32 %v779, %v1050
    %v1052 = vpop.f32.mrb[0].mxu0
    %v1053 = vadd.f32 %v783, %v1052
    %v1054 = vpop.f32.mrb[0].mxu0
    %v1055 = vadd.f32 %v779, %v1054
    %v1056 = vpop.f32.mrb[0].mxu0
    %v1057 = vadd.f32 %v783, %v1056
    %1058 = vdwg.mxu0
    %v1059 = vmax.f32 %v981, 0.0
    %v1060 = vmax.f32 %v983, 0.0
    %v1061 = vmax.f32 %v985, 0.0
    %v1062 = vmax.f32 %v987, 0.0
    %v1063 = vmax.f32 %v991, 0.0
    %v1064 = vmax.f32 %v993, 0.0
    %v1065 = vmax.f32 %v995, 0.0
    %v1066 = vmax.f32 %v997, 0.0
    %v1067 = vmax.f32 %v1001, 0.0
    %v1068 = vmax.f32 %v1003, 0.0
    %v1069 = vmax.f32 %v1005, 0.0
    %v1070 = vmax.f32 %v1007, 0.0
    %v1071 = vmax.f32 %v1011, 0.0
    %v1072 = vmax.f32 %v1013, 0.0
    %v1073 = vmax.f32 %v1015, 0.0
    %v1074 = vmax.f32 %v1017, 0.0
    %v1075 = vmax.f32 %v1021, 0.0
    %v1076 = vmax.f32 %v1023, 0.0
    %v1077 = vmax.f32 %v1025, 0.0
    %v1078 = vmax.f32 %v1027, 0.0
    %v1079 = vmax.f32 %v1031, 0.0
    %v1080 = vmax.f32 %v1033, 0.0
    %v1081 = vmax.f32 %v1035, 0.0
    %v1082 = vmax.f32 %v1037, 0.0
    %v1083 = vmax.f32 %v1041, 0.0
    %v1084 = vmax.f32 %v1043, 0.0
    %v1085 = vmax.f32 %v1045, 0.0
    %v1086 = vmax.f32 %v1047, 0.0
    %v1087 = vmax.f32 %v1051, 0.0
    %v1088 = vmax.f32 %v1053, 0.0
    %v1089 = vmax.f32 %v1055, 0.0
    %v1090 = vmax.f32 %v1057, 0.0
    %v1091 = vpack.c.bf16 %v1061, %v1059
    %v1092 = vpack.c.bf16 %v1062, %v1060
    %v1093 = vpack.c.bf16 %v1065, %v1063
    %v1094 = vpack.c.bf16 %v1066, %v1064
    %v1095 = vpack.c.bf16 %v1069, %v1067
    %v1096 = vpack.c.bf16 %v1070, %v1068
    %v1097 = vpack.c.bf16 %v1073, %v1071
    %v1098 = vpack.c.bf16 %v1074, %v1072
    %v1099 = vpack.c.bf16 %v1077, %v1075
    %v1100 = vpack.c.bf16 %v1078, %v1076
    %v1101 = vpack.c.bf16 %v1081, %v1079
    %v1102 = vpack.c.bf16 %v1082, %v1080
    %v1103 = vpack.c.bf16 %v1085, %v1083
    %v1104 = vpack.c.bf16 %v1086, %v1084
    %v1105 = vpack.c.bf16 %v1089, %v1087
    %v1106 = vpack.c.bf16 %v1090, %v1088
    %v1107 = vld [vmem:[#allocation7] sm:$0xff]
    %v1108 = vld [vmem:[#allocation7 + $0x8] sm:$0xff]
    %v1109 = vld [vmem:[#allocation7 + $0x10] sm:$0xff]
    %v1110 = vld [vmem:[#allocation7 + $0x18] sm:$0xff]
    %v1111 = vld [vmem:[#allocation7 + $0x20] sm:$0xff]
    %v1112 = vld [vmem:[#allocation7 + $0x28] sm:$0xff]
    %v1113 = vld [vmem:[#allocation7 + $0x30] sm:$0xff]
    %v1114 = vld [vmem:[#allocation7 + $0x38] sm:$0xff]
    %v1115 = vld [vmem:[#allocation7 + $0x40] sm:$0xff]
    %v1116 = vld [vmem:[#allocation7 + $0x48] sm:$0xff]
    %v1117 = vld [vmem:[#allocation7 + $0x50] sm:$0xff]
    %v1118 = vld [vmem:[#allocation7 + $0x58] sm:$0xff]
    %v1119 = vld [vmem:[#allocation7 + $0x60] sm:$0xff]
    %v1120 = vld [vmem:[#allocation7 + $0x68] sm:$0xff]
    %v1121 = vld [vmem:[#allocation7 + $0x70] sm:$0xff]
    %v1122 = vld [vmem:[#allocation7 + $0x78] sm:$0xff]
    %v1123 = vld [vmem:[#allocation7 + $0x80] sm:$0xff]
    %v1124 = vld [vmem:[#allocation7 + $0x88] sm:$0xff]
    %v1125 = vld [vmem:[#allocation7 + $0x90] sm:$0xff]
    %v1126 = vld [vmem:[#allocation7 + $0x98] sm:$0xff]
    %v1127 = vld [vmem:[#allocation7 + $0xa0] sm:$0xff]
    %v1128 = vld [vmem:[#allocation7 + $0xa8] sm:$0xff]
    %v1129 = vld [vmem:[#allocation7 + $0xb0] sm:$0xff]
    %v1130 = vld [vmem:[#allocation7 + $0xb8] sm:$0xff]
    %v1131 = vld [vmem:[#allocation7 + $0xc0] sm:$0xff]
    %v1132 = vld [vmem:[#allocation7 + $0xc8] sm:$0xff]
    %v1133 = vld [vmem:[#allocation7 + $0xd0] sm:$0xff]
    %v1134 = vld [vmem:[#allocation7 + $0xd8] sm:$0xff]
    %v1135 = vld [vmem:[#allocation7 + $0xe0] sm:$0xff]
    %v1136 = vld [vmem:[#allocation7 + $0xe8] sm:$0xff]
    %v1137 = vld [vmem:[#allocation7 + $0xf0] sm:$0xff]
    %v1138 = vld [vmem:[#allocation7 + $0xf8] sm:$0xff]
    %v1139 = vld [vmem:[%s8] sm:$0x3]
    %v1141 = vlaneseq
    %v1142 = vshrl.u32 %v1141, 7
    %v1143 = vsub.s32 0, %v1142
    %v1144 = vrot.slane %v1139, %v1143
    %v1145 = vlaneseq
    %v1146 = vshrl.u32 %v1145, 7
    %v1147 = vsub.s32 1, %v1146
    %v1148 = vrot.slane %v1139, %v1147
    %v1183 = vunpack.c.l.b16 %v1107
    %v1184 = vunpack.c.h.b16 %v1107
    %v1185 = vunpack.c.l.b16 %v1108
    %v1186 = vunpack.c.h.b16 %v1108
    %v1187 = vunpack.c.l.b16 %v1109
    %v1188 = vunpack.c.h.b16 %v1109
    %v1189 = vunpack.c.l.b16 %v1110
    %v1190 = vunpack.c.h.b16 %v1110
    %v1191 = vunpack.c.l.b16 %v1111
    %v1192 = vunpack.c.h.b16 %v1111
    %v1193 = vunpack.c.l.b16 %v1112
    %v1194 = vunpack.c.h.b16 %v1112
    %v1195 = vunpack.c.l.b16 %v1113
    %v1196 = vunpack.c.h.b16 %v1113
    %v1197 = vunpack.c.l.b16 %v1114
    %v1198 = vunpack.c.h.b16 %v1114
    %v1199 = vunpack.c.l.b16 %v1115
    %v1200 = vunpack.c.h.b16 %v1115
    %v1201 = vunpack.c.l.b16 %v1116
    %v1202 = vunpack.c.h.b16 %v1116
    %v1203 = vunpack.c.l.b16 %v1117
    %v1204 = vunpack.c.h.b16 %v1117
    %v1205 = vunpack.c.l.b16 %v1118
    %v1206 = vunpack.c.h.b16 %v1118
    %v1207 = vunpack.c.l.b16 %v1119
    %v1208 = vunpack.c.h.b16 %v1119
    %v1209 = vunpack.c.l.b16 %v1120
    %v1210 = vunpack.c.h.b16 %v1120
    %v1211 = vunpack.c.l.b16 %v1121
    %v1212 = vunpack.c.h.b16 %v1121
    %v1213 = vunpack.c.l.b16 %v1122
    %v1214 = vunpack.c.h.b16 %v1122
    %v1215 = vunpack.c.l.b16 %v1123
    %v1216 = vunpack.c.h.b16 %v1123
    %v1217 = vunpack.c.l.b16 %v1124
    %v1218 = vunpack.c.h.b16 %v1124
    %v1219 = vunpack.c.l.b16 %v1125
    %v1220 = vunpack.c.h.b16 %v1125
    %v1221 = vunpack.c.l.b16 %v1126
    %v1222 = vunpack.c.h.b16 %v1126
    %v1223 = vunpack.c.l.b16 %v1127
    %v1224 = vunpack.c.h.b16 %v1127
    %v1225 = vunpack.c.l.b16 %v1128
    %v1226 = vunpack.c.h.b16 %v1128
    %v1227 = vunpack.c.l.b16 %v1129
    %v1228 = vunpack.c.h.b16 %v1129
    %v1229 = vunpack.c.l.b16 %v1130
    %v1230 = vunpack.c.h.b16 %v1130
    %v1231 = vunpack.c.l.b16 %v1131
    %v1232 = vunpack.c.h.b16 %v1131
    %v1233 = vunpack.c.l.b16 %v1132
    %v1234 = vunpack.c.h.b16 %v1132
    %v1235 = vunpack.c.l.b16 %v1133
    %v1236 = vunpack.c.h.b16 %v1133
    %v1237 = vunpack.c.l.b16 %v1134
    %v1238 = vunpack.c.h.b16 %v1134
    %v1239 = vunpack.c.l.b16 %v1135
    %v1240 = vunpack.c.h.b16 %v1135
    %v1241 = vunpack.c.l.b16 %v1136
    %v1242 = vunpack.c.h.b16 %v1136
    %v1243 = vunpack.c.l.b16 %v1137
    %v1244 = vunpack.c.h.b16 %v1137
    %v1245 = vunpack.c.l.b16 %v1138
    %v1246 = vunpack.c.h.b16 %v1138
    %v1247 = vpack.c.b16 %v1185, %v1183
    %v1248 = vpack.c.b16 %v1186, %v1184
    %v1249 = vpack.c.b16 %v1189, %v1187
    %v1250 = vpack.c.b16 %v1190, %v1188
    %v1251 = vpack.c.b16 %v1193, %v1191
    %v1252 = vpack.c.b16 %v1194, %v1192
    %v1253 = vpack.c.b16 %v1197, %v1195
    %v1254 = vpack.c.b16 %v1198, %v1196
    %v1255 = vpack.c.b16 %v1201, %v1199
    %v1256 = vpack.c.b16 %v1202, %v1200
    %v1257 = vpack.c.b16 %v1205, %v1203
    %v1258 = vpack.c.b16 %v1206, %v1204
    %v1259 = vpack.c.b16 %v1209, %v1207
    %v1260 = vpack.c.b16 %v1210, %v1208
    %v1261 = vpack.c.b16 %v1213, %v1211
    %v1262 = vpack.c.b16 %v1214, %v1212
    %v1263 = vpack.c.b16 %v1217, %v1215
    %v1264 = vpack.c.b16 %v1218, %v1216
    %v1265 = vpack.c.b16 %v1221, %v1219
    %v1266 = vpack.c.b16 %v1222, %v1220
    %v1267 = vpack.c.b16 %v1225, %v1223
    %v1268 = vpack.c.b16 %v1226, %v1224
    %v1269 = vpack.c.b16 %v1229, %v1227
    %v1270 = vpack.c.b16 %v1230, %v1228
    %v1271 = vpack.c.b16 %v1233, %v1231
    %v1272 = vpack.c.b16 %v1234, %v1232
    %v1273 = vpack.c.b16 %v1237, %v1235
    %v1274 = vpack.c.b16 %v1238, %v1236
    %v1275 = vpack.c.b16 %v1241, %v1239
    %v1276 = vpack.c.b16 %v1242, %v1240
    %v1277 = vpack.c.b16 %v1245, %v1243
    %v1278 = vpack.c.b16 %v1246, %v1244
    %1311 = vmatprep.subr.bf16.mxu0 %v1248
    %1312 = vmatpush1.bf16.msra.mxu0 %v1247
    %1313 = vmatprep.subr.bf16.mxu0 %v1250
    %1314 = vmatpush1.bf16.msra.mxu0 %v1249
    %1315 = vmatprep.subr.bf16.mxu0 %v1252
    %1316 = vmatpush1.bf16.msra.mxu0 %v1251
    %1317 = vmatprep.subr.bf16.mxu0 %v1254
    %1318 = vmatpush1.bf16.msra.mxu0 %v1253
    %1319 = vmatprep.subr.bf16.mxu0 %v1256
    %1320 = vmatpush1.bf16.msra.mxu0 %v1255
    %1321 = vmatprep.subr.bf16.mxu0 %v1258
    %1322 = vmatpush1.bf16.msra.mxu0 %v1257
    %1323 = vmatprep.subr.bf16.mxu0 %v1260
    %1324 = vmatpush1.bf16.msra.mxu0 %v1259
    %1325 = vmatprep.subr.bf16.mxu0 %v1262
    %1326 = vmatpush1.bf16.msra.mxu0 %v1261
    %1327 = vmatprep.subr.bf16.mxu0 %v1264
    %1328 = vmatpush1.bf16.msra.mxu0 %v1263
    %1329 = vmatprep.subr.bf16.mxu0 %v1266
    %1330 = vmatpush1.bf16.msra.mxu0 %v1265
    %1331 = vmatprep.subr.bf16.mxu0 %v1268
    %1332 = vmatpush1.bf16.msra.mxu0 %v1267
    %1333 = vmatprep.subr.bf16.mxu0 %v1270
    %1334 = vmatpush1.bf16.msra.mxu0 %v1269
    %1335 = vmatprep.subr.bf16.mxu0 %v1272
    %1336 = vmatpush1.bf16.msra.mxu0 %v1271
    %1337 = vmatprep.subr.bf16.mxu0 %v1274
    %1338 = vmatpush1.bf16.msra.mxu0 %v1273
    %1339 = vmatprep.subr.bf16.mxu0 %v1276
    %1340 = vmatpush1.bf16.msra.mxu0 %v1275
    %1341 = vmatprep.subr.bf16.mxu0 %v1278
    %1342 = vmatpush1.bf16.msra.mxu0 %v1277
    %1343 = vmatprep.mubr.bf16.mxu0 %v1092
    %1344 = vmatmul.mubr.bf16.gmra.mrb[0].mxu0 %v1091
    %v1345 = vpop.f32.mrb[0].mxu0
    %v1346 = vadd.f32 %v1144, %v1345
    %v1347 = vpop.f32.mrb[0].mxu0
    %v1348 = vadd.f32 %v1148, %v1347
    %v1349 = vpop.f32.mrb[0].mxu0
    %v1350 = vadd.f32 %v1144, %v1349
    %v1351 = vpop.f32.mrb[0].mxu0
    %v1352 = vadd.f32 %v1148, %v1351
    %1353 = vmatprep.mubr.bf16.mxu0 %v1094
    %1354 = vmatmul.mubr.bf16.gmra.mrb[0].mxu0 %v1093
    %v1355 = vpop.f32.mrb[0].mxu0
    %v1356 = vadd.f32 %v1144, %v1355
    %v1357 = vpop.f32.mrb[0].mxu0
    %v1358 = vadd.f32 %v1148, %v1357
    %v1359 = vpop.f32.mrb[0].mxu0
    %v1360 = vadd.f32 %v1144, %v1359
    %v1361 = vpop.f32.mrb[0].mxu0
    %v1362 = vadd.f32 %v1148, %v1361
    %1363 = vmatprep.mubr.bf16.mxu0 %v1096
    %1364 = vmatmul.mubr.bf16.gmra.mrb[0].mxu0 %v1095
    %v1365 = vpop.f32.mrb[0].mxu0
    %v1366 = vadd.f32 %v1144, %v1365
    %v1367 = vpop.f32.mrb[0].mxu0
    %v1368 = vadd.f32 %v1148, %v1367
    %v1369 = vpop.f32.mrb[0].mxu0
    %v1370 = vadd.f32 %v1144, %v1369
    %v1371 = vpop.f32.mrb[0].mxu0
    %v1372 = vadd.f32 %v1148, %v1371
    %1373 = vmatprep.mubr.bf16.mxu0 %v1098
    %1374 = vmatmul.mubr.bf16.gmra.mrb[0].mxu0 %v1097
    %v1375 = vpop.f32.mrb[0].mxu0
    %v1376 = vadd.f32 %v1144, %v1375
    %v1377 = vpop.f32.mrb[0].mxu0
    %v1378 = vadd.f32 %v1148, %v1377
    %v1379 = vpop.f32.mrb[0].mxu0
    %v1380 = vadd.f32 %v1144, %v1379
    %v1381 = vpop.f32.mrb[0].mxu0
    %v1382 = vadd.f32 %v1148, %v1381
    %1383 = vmatprep.mubr.bf16.mxu0 %v1100
    %1384 = vmatmul.mubr.bf16.gmra.mrb[0].mxu0 %v1099
    %v1385 = vpop.f32.mrb[0].mxu0
    %v1386 = vadd.f32 %v1144, %v1385
    %v1387 = vpop.f32.mrb[0].mxu0
    %v1388 = vadd.f32 %v1148, %v1387
    %v1389 = vpop.f32.mrb[0].mxu0
    %v1390 = vadd.f32 %v1144, %v1389
    %v1391 = vpop.f32.mrb[0].mxu0
    %v1392 = vadd.f32 %v1148, %v1391
    %1393 = vmatprep.mubr.bf16.mxu0 %v1102
    %1394 = vmatmul.mubr.bf16.gmra.mrb[0].mxu0 %v1101
    %v1395 = vpop.f32.mrb[0].mxu0
    %v1396 = vadd.f32 %v1144, %v1395
    %v1397 = vpop.f32.mrb[0].mxu0
    %v1398 = vadd.f32 %v1148, %v1397
    %v1399 = vpop.f32.mrb[0].mxu0
    %v1400 = vadd.f32 %v1144, %v1399
    %v1401 = vpop.f32.mrb[0].mxu0
    %v1402 = vadd.f32 %v1148, %v1401
    %1403 = vmatprep.mubr.bf16.mxu0 %v1104
    %1404 = vmatmul.mubr.bf16.gmra.mrb[0].mxu0 %v1103
    %v1405 = vpop.f32.mrb[0].mxu0
    %v1406 = vadd.f32 %v1144, %v1405
    %v1407 = vpop.f32.mrb[0].mxu0
    %v1408 = vadd.f32 %v1148, %v1407
    %v1409 = vpop.f32.mrb[0].mxu0
    %v1410 = vadd.f32 %v1144, %v1409
    %v1411 = vpop.f32.mrb[0].mxu0
    %v1412 = vadd.f32 %v1148, %v1411
    %1413 = vmatprep.mubr.bf16.mxu0 %v1106
    %1414 = vmatmul.mubr.bf16.gmra.mrb[0].mxu0 %v1105
    %v1415 = vpop.f32.mrb[0].mxu0
    %v1416 = vadd.f32 %v1144, %v1415
    %v1417 = vpop.f32.mrb[0].mxu0
    %v1418 = vadd.f32 %v1148, %v1417
    %v1419 = vpop.f32.mrb[0].mxu0
    %v1420 = vadd.f32 %v1144, %v1419
    %v1421 = vpop.f32.mrb[0].mxu0
    %v1422 = vadd.f32 %v1148, %v1421
    %1423 = vdwg.mxu0
    %v1424 = vmax.f32 %v1346, 0.0
    %v1425 = vmax.f32 %v1348, 0.0
    %v1426 = vmax.f32 %v1350, 0.0
    %v1427 = vmax.f32 %v1352, 0.0
    %v1428 = vmax.f32 %v1356, 0.0
    %v1429 = vmax.f32 %v1358, 0.0
    %v1430 = vmax.f32 %v1360, 0.0
    %v1431 = vmax.f32 %v1362, 0.0
    %v1432 = vmax.f32 %v1366, 0.0
    %v1433 = vmax.f32 %v1368, 0.0
    %v1434 = vmax.f32 %v1370, 0.0
    %v1435 = vmax.f32 %v1372, 0.0
    %v1436 = vmax.f32 %v1376, 0.0
    %v1437 = vmax.f32 %v1378, 0.0
    %v1438 = vmax.f32 %v1380, 0.0
    %v1439 = vmax.f32 %v1382, 0.0
    %v1440 = vmax.f32 %v1386, 0.0
    %v1441 = vmax.f32 %v1388, 0.0
    %v1442 = vmax.f32 %v1390, 0.0
    %v1443 = vmax.f32 %v1392, 0.0
    %v1444 = vmax.f32 %v1396, 0.0
    %v1445 = vmax.f32 %v1398, 0.0
    %v1446 = vmax.f32 %v1400, 0.0
    %v1447 = vmax.f32 %v1402, 0.0
    %v1448 = vmax.f32 %v1406, 0.0
    %v1449 = vmax.f32 %v1408, 0.0
    %v1450 = vmax.f32 %v1410, 0.0
    %v1451 = vmax.f32 %v1412, 0.0
    %v1452 = vmax.f32 %v1416, 0.0
    %v1453 = vmax.f32 %v1418, 0.0
    %v1454 = vmax.f32 %v1420, 0.0
    %v1455 = vmax.f32 %v1422, 0.0
    %v1456 = vpack.c.bf16 %v1426, %v1424
    %v1457 = vpack.c.bf16 %v1427, %v1425
    %v1458 = vpack.c.bf16 %v1430, %v1428
    %v1459 = vpack.c.bf16 %v1431, %v1429
    %v1460 = vpack.c.bf16 %v1434, %v1432
    %v1461 = vpack.c.bf16 %v1435, %v1433
    %v1462 = vpack.c.bf16 %v1438, %v1436
    %v1463 = vpack.c.bf16 %v1439, %v1437
    %v1464 = vpack.c.bf16 %v1442, %v1440
    %v1465 = vpack.c.bf16 %v1443, %v1441
    %v1466 = vpack.c.bf16 %v1446, %v1444
    %v1467 = vpack.c.bf16 %v1447, %v1445
    %v1468 = vpack.c.bf16 %v1450, %v1448
    %v1469 = vpack.c.bf16 %v1451, %v1449
    %v1470 = vpack.c.bf16 %v1454, %v1452
    %v1471 = vpack.c.bf16 %v1455, %v1453
    %v1472 = vld [vmem:[%s9] sm:$0xf]
    %v1473 = vld [vmem:[%s9 + $0x4] sm:$0xf]
    %v1474 = vld [vmem:[%s9 + $0x8] sm:$0xf]
    %v1475 = vld [vmem:[%s9 + $0xc] sm:$0xf]
    %v1476 = vld [vmem:[%s9 + $0x10] sm:$0xf]
    %v1477 = vld [vmem:[%s9 + $0x14] sm:$0xf]
    %v1478 = vld [vmem:[%s9 + $0x18] sm:$0xf]
    %v1479 = vld [vmem:[%s9 + $0x1c] sm:$0xf]
    %v1480 = vld [vmem:[%s9 + $0x20] sm:$0xf]
    %v1481 = vld [vmem:[%s9 + $0x24] sm:$0xf]
    %v1482 = vld [vmem:[%s9 + $0x28] sm:$0xf]
    %v1483 = vld [vmem:[%s9 + $0x2c] sm:$0xf]
    %v1484 = vld [vmem:[%s9 + $0x30] sm:$0xf]
    %v1485 = vld [vmem:[%s9 + $0x34] sm:$0xf]
    %v1486 = vld [vmem:[%s9 + $0x38] sm:$0xf]
    %v1487 = vld [vmem:[%s9 + $0x3c] sm:$0xf]
    %v1488 = vld [vmem:[%s9 + $0x40] sm:$0xf]
    %v1489 = vld [vmem:[%s9 + $0x44] sm:$0xf]
    %v1490 = vld [vmem:[%s9 + $0x48] sm:$0xf]
    %v1491 = vld [vmem:[%s9 + $0x4c] sm:$0xf]
    %v1492 = vld [vmem:[%s9 + $0x50] sm:$0xf]
    %v1493 = vld [vmem:[%s9 + $0x54] sm:$0xf]
    %v1494 = vld [vmem:[%s9 + $0x58] sm:$0xf]
    %v1495 = vld [vmem:[%s9 + $0x5c] sm:$0xf]
    %v1496 = vld [vmem:[%s9 + $0x60] sm:$0xf]
    %v1497 = vld [vmem:[%s9 + $0x64] sm:$0xf]
    %v1498 = vld [vmem:[%s9 + $0x68] sm:$0xf]
    %v1499 = vld [vmem:[%s9 + $0x6c] sm:$0xf]
    %v1500 = vld [vmem:[%s9 + $0x70] sm:$0xf]
    %v1501 = vld [vmem:[%s9 + $0x74] sm:$0xf]
    %v1502 = vld [vmem:[%s9 + $0x78] sm:$0xf]
    %v1503 = vld [vmem:[%s9 + $0x7c] sm:$0xf]
    %v1504 = vld [vmem:[%s10] sm:$0x1]
    %v1506 = vlaneseq
    %v1507 = vshrl.u32 %v1506, 7
    %v1508 = vsub.s32 0, %v1507
    %v1509 = vrot.slane %v1504, %v1508
    %v1543 = vunpack.c.l.b16 %v1472
    %v1544 = vunpack.c.l.b16 %v1473
    %v1545 = vunpack.c.l.b16 %v1474
    %v1546 = vunpack.c.l.b16 %v1475
    %v1547 = vunpack.c.l.b16 %v1476
    %v1548 = vunpack.c.l.b16 %v1477
    %v1549 = vunpack.c.l.b16 %v1478
    %v1550 = vunpack.c.l.b16 %v1479
    %v1551 = vunpack.c.l.b16 %v1480
    %v1552 = vunpack.c.l.b16 %v1481
    %v1553 = vunpack.c.l.b16 %v1482
    %v1554 = vunpack.c.l.b16 %v1483
    %v1555 = vunpack.c.l.b16 %v1484
    %v1556 = vunpack.c.l.b16 %v1485
    %v1557 = vunpack.c.l.b16 %v1486
    %v1558 = vunpack.c.l.b16 %v1487
    %v1559 = vunpack.c.l.b16 %v1488
    %v1560 = vunpack.c.l.b16 %v1489
    %v1561 = vunpack.c.l.b16 %v1490
    %v1562 = vunpack.c.l.b16 %v1491
    %v1563 = vunpack.c.l.b16 %v1492
    %v1564 = vunpack.c.l.b16 %v1493
    %v1565 = vunpack.c.l.b16 %v1494
    %v1566 = vunpack.c.l.b16 %v1495
    %v1567 = vunpack.c.l.b16 %v1496
    %v1568 = vunpack.c.l.b16 %v1497
    %v1569 = vunpack.c.l.b16 %v1498
    %v1570 = vunpack.c.l.b16 %v1499
    %v1571 = vunpack.c.l.b16 %v1500
    %v1572 = vunpack.c.l.b16 %v1501
    %v1573 = vunpack.c.l.b16 %v1502
    %v1574 = vunpack.c.l.b16 %v1503
    %v1575 = vpack.c.b16 %v1544, %v1543
    %v1576 = vpack.c.b16 %v1546, %v1545
    %v1577 = vpack.c.b16 %v1548, %v1547
    %v1578 = vpack.c.b16 %v1550, %v1549
    %v1579 = vpack.c.b16 %v1552, %v1551
    %v1580 = vpack.c.b16 %v1554, %v1553
    %v1581 = vpack.c.b16 %v1556, %v1555
    %v1582 = vpack.c.b16 %v1558, %v1557
    %v1583 = vpack.c.b16 %v1560, %v1559
    %v1584 = vpack.c.b16 %v1562, %v1561
    %v1585 = vpack.c.b16 %v1564, %v1563
    %v1586 = vpack.c.b16 %v1566, %v1565
    %v1587 = vpack.c.b16 %v1568, %v1567
    %v1588 = vpack.c.b16 %v1570, %v1569
    %v1589 = vpack.c.b16 %v1572, %v1571
    %v1590 = vpack.c.b16 %v1574, %v1573
    %1607 = vmatprep.subr.bf16.mxu0 0
    %1608 = vmatpush1.bf16.msra.mxu0 %v1575
    %1609 = vmatprep.subr.bf16.mxu0 0
    %1610 = vmatpush1.bf16.msra.mxu0 %v1576
    %1611 = vmatprep.subr.bf16.mxu0 0
    %1612 = vmatpush1.bf16.msra.mxu0 %v1577
    %1613 = vmatprep.subr.bf16.mxu0 0
    %1614 = vmatpush1.bf16.msra.mxu0 %v1578
    %1615 = vmatprep.subr.bf16.mxu0 0
    %1616 = vmatpush1.bf16.msra.mxu0 %v1579
    %1617 = vmatprep.subr.bf16.mxu0 0
    %1618 = vmatpush1.bf16.msra.mxu0 %v1580
    %1619 = vmatprep.subr.bf16.mxu0 0
    %1620 = vmatpush1.bf16.msra.mxu0 %v1581
    %1621 = vmatprep.subr.bf16.mxu0 0
    %1622 = vmatpush1.bf16.msra.mxu0 %v1582
    %1623 = vmatprep.subr.bf16.mxu0 0
    %1624 = vmatpush1.bf16.msra.mxu0 %v1583
    %1625 = vmatprep.subr.bf16.mxu0 0
    %1626 = vmatpush1.bf16.msra.mxu0 %v1584
    %1627 = vmatprep.subr.bf16.mxu0 0
    %1628 = vmatpush1.bf16.msra.mxu0 %v1585
    %1629 = vmatprep.subr.bf16.mxu0 0
    %1630 = vmatpush1.bf16.msra.mxu0 %v1586
    %1631 = vmatprep.subr.bf16.mxu0 0
    %1632 = vmatpush1.bf16.msra.mxu0 %v1587
    %1633 = vmatprep.subr.bf16.mxu0 0
    %1634 = vmatpush1.bf16.msra.mxu0 %v1588
    %1635 = vmatprep.subr.bf16.mxu0 0
    %1636 = vmatpush1.bf16.msra.mxu0 %v1589
    %1637 = vmatprep.subr.bf16.mxu0 0
    %1638 = vmatpush1.bf16.msra.mxu0 %v1590
    %1639 = vmatprep.mubr.bf16.mxu0 %v1457
    %1640 = vmatmul.mubr.bf16.gmra.mrb[0].mxu0 %v1456
    %v1641 = vpop.f32.mrb[0].mxu0
    %v1642 = vadd.f32 %v1509, %v1641
    %v1643 = vpop.f32.mrb[0].mxu0
    %v1644 = vpop.f32.mrb[0].mxu0
    %v1645 = vadd.f32 %v1509, %v1644
    %v1646 = vpop.f32.mrb[0].mxu0
    %1647 = vmatprep.mubr.bf16.mxu0 %v1459
    %1648 = vmatmul.mubr.bf16.gmra.mrb[0].mxu0 %v1458
    %v1649 = vpop.f32.mrb[0].mxu0
    %v1650 = vadd.f32 %v1509, %v1649
    %v1651 = vpop.f32.mrb[0].mxu0
    %v1652 = vpop.f32.mrb[0].mxu0
    %v1653 = vadd.f32 %v1509, %v1652
    %v1654 = vpop.f32.mrb[0].mxu0
    %1655 = vmatprep.mubr.bf16.mxu0 %v1461
    %1656 = vmatmul.mubr.bf16.gmra.mrb[0].mxu0 %v1460
    %v1657 = vpop.f32.mrb[0].mxu0
    %v1658 = vadd.f32 %v1509, %v1657
    %v1659 = vpop.f32.mrb[0].mxu0
    %v1660 = vpop.f32.mrb[0].mxu0
    %v1661 = vadd.f32 %v1509, %v1660
    %v1662 = vpop.f32.mrb[0].mxu0
    %1663 = vmatprep.mubr.bf16.mxu0 %v1463
    %1664 = vmatmul.mubr.bf16.gmra.mrb[0].mxu0 %v1462
    %v1665 = vpop.f32.mrb[0].mxu0
    %v1666 = vadd.f32 %v1509, %v1665
    %v1667 = vpop.f32.mrb[0].mxu0
    %v1668 = vpop.f32.mrb[0].mxu0
    %v1669 = vadd.f32 %v1509, %v1668
    %v1670 = vpop.f32.mrb[0].mxu0
    %1671 = vmatprep.mubr.bf16.mxu0 %v1465
    %1672 = vmatmul.mubr.bf16.gmra.mrb[0].mxu0 %v1464
    %v1673 = vpop.f32.mrb[0].mxu0
    %v1674 = vadd.f32 %v1509, %v1673
    %v1675 = vpop.f32.mrb[0].mxu0
    %v1676 = vpop.f32.mrb[0].mxu0
    %v1677 = vadd.f32 %v1509, %v1676
    %v1678 = vpop.f32.mrb[0].mxu0
    %1679 = vmatprep.mubr.bf16.mxu0 %v1467
    %1680 = vmatmul.mubr.bf16.gmra.mrb[0].mxu0 %v1466
    %v1681 = vpop.f32.mrb[0].mxu0
    %v1682 = vadd.f32 %v1509, %v1681
    %v1683 = vpop.f32.mrb[0].mxu0
    %v1684 = vpop.f32.mrb[0].mxu0
    %v1685 = vadd.f32 %v1509, %v1684
    %v1686 = vpop.f32.mrb[0].mxu0
    %1687 = vmatprep.mubr.bf16.mxu0 %v1469
    %1688 = vmatmul.mubr.bf16.gmra.mrb[0].mxu0 %v1468
    %v1689 = vpop.f32.mrb[0].mxu0
    %v1690 = vadd.f32 %v1509, %v1689
    %v1691 = vpop.f32.mrb[0].mxu0
    %v1692 = vpop.f32.mrb[0].mxu0
    %v1693 = vadd.f32 %v1509, %v1692
    %v1694 = vpop.f32.mrb[0].mxu0
    %1695 = vmatprep.mubr.bf16.mxu0 %v1471
    %1696 = vmatmul.mubr.bf16.gmra.mrb[0].mxu0 %v1470
    %v1697 = vpop.f32.mrb[0].mxu0
    %v1698 = vadd.f32 %v1509, %v1697
    %v1699 = vpop.f32.mrb[0].mxu0
    %v1700 = vpop.f32.mrb[0].mxu0
    %v1701 = vadd.f32 %v1509, %v1700
    %v1702 = vpop.f32.mrb[0].mxu0
    %1703 = vdwg.mxu0
    %1704 = vst [vmem:[%s11] sm:$0xff] %v1642
    %1705 = vst [vmem:[%s11 + $0x8] sm:$0xff] %v1645
    %1706 = vst [vmem:[%s11 + $0x10] sm:$0xff] %v1650
    %1707 = vst [vmem:[%s11 + $0x18] sm:$0xff] %v1653
    %1708 = vst [vmem:[%s11 + $0x20] sm:$0xff] %v1658
    %1709 = vst [vmem:[%s11 + $0x28] sm:$0xff] %v1661
    %1710 = vst [vmem:[%s11 + $0x30] sm:$0xff] %v1666
    %1711 = vst [vmem:[%s11 + $0x38] sm:$0xff] %v1669
    %1712 = vst [vmem:[%s11 + $0x40] sm:$0xff] %v1674
    %1713 = vst [vmem:[%s11 + $0x48] sm:$0xff] %v1677
    %1714 = vst [vmem:[%s11 + $0x50] sm:$0xff] %v1682
    %1715 = vst [vmem:[%s11 + $0x58] sm:$0xff] %v1685
    %1716 = vst [vmem:[%s11 + $0x60] sm:$0xff] %v1690
    %1717 = vst [vmem:[%s11 + $0x68] sm:$0xff] %v1693
    %1718 = vst [vmem:[%s11 + $0x70] sm:$0xff] %v1698
    %1719 = vst [vmem:[%s11 + $0x78] sm:$0xff] %v1701
    // Predicated region
    $region62: #{mlp_t_forward.1} parent=1 // pred_check
      _
    $region63: #{mlp_t_forward.1} parent=1 // pred_check_branch
      %1721 = sbr.rel (0) target = $region65
    $region64: #{mlp_t_forward.1} parent=1 // pred_region
      _
    $region65: #{mlp_t_forward.1} parent=1 // pred_fallthru
      _
    // Predicated region
    $region66: #{mlp_t_forward.1} parent=1 // pred_check
      _
    $region67: #{mlp_t_forward.1} parent=1 // pred_check_branch
      %1723 = sbr.rel (0) target = $region69
    $region68: #{mlp_t_forward.1} parent=1 // pred_region
      _
    $region69: #{mlp_t_forward.1} parent=1 // pred_fallthru
      _
    %1724 = vsyncpa [#allocation3], 1
    %1725 = vsyncpa [#allocation5], 1
    %1726 = vsyncpa [#allocation8], 1

</llo_original>
